<compile_context>
chip_gen: v5e
topology: v5e:2x2
jax: 0.10.0
libtpu: 0.0.40
codegen_flags: <defaults>
</compile_context>

<pallas_src>
import functools
import math

import jax
import jax.numpy as jnp
from jax.experimental import pallas as pl
from jax.experimental.pallas import tpu as pltpu

LANE = 128
SUBLANE = 8


def _round_up(x, m):
    return ((x + m - 1) // m) * m


# ---------------------------------------------------------------------------
# Fused Pallas kernel: one grid step == one batch element.
# ---------------------------------------------------------------------------

def _fused_vlr_kernel(
    cols_ref,                     # (1, HW, KP) bf16   im2col'd conv input
    conv_w_ref, conv_b_ref,       # (KP, DP) bf16 / (1, DP) f32
    pos_q_ref,                    # (TP, DP) bf16
    v_cls_w_ref, v_cls_b_ref,     # (DP, CP) bf16 / (1, CP) f32 (pad bias -1e30)
    emb_ref, lang_pos_ref,        # (CP, DP) bf16 / (TP, DP) f32
    l_w1_ref, l_b1_ref,
    l_w2_ref, l_b2_ref,
    l_cls_w_ref, l_cls_b_ref,
    g_wl_ref, g_wv_ref, g_b_ref,
    f_cls_w_ref, f_cls_b_ref,
    l_out_ref, v_out_ref, vl_out_ref,   # each (1, TP, CP) f32
    *, attn_scale):
    f32 = jnp.float32
    bf16 = jnp.bfloat16

    def mm(a, b):
        # MXU in bf16, f32 accumulation; elementwise math stays f32.
        return jnp.dot(a.astype(bf16), b.astype(bf16), preferred_element_type=f32)

    def softmax(x):
        x = x - jnp.max(x, axis=-1, keepdims=True)
        e = jnp.exp(x)
        return e * pl.reciprocal(jnp.sum(e, axis=-1, keepdims=True), approx=True)

    # ---- vision backbone: 3x3 conv (im2col matmul) + ReLU -> feats [HW, DP]
    feats = mm(cols_ref[0], conv_w_ref[...]) + conv_b_ref[...]
    feats = jnp.maximum(feats, 0.0)

    # ---- position attention: learned queries attend over all HW positions
    scores = jax.lax.dot_general(
        pos_q_ref[...], feats.astype(bf16),
        (((1,), (1,)), ((), ())), preferred_element_type=f32) * attn_scale
    p = softmax(scores)                          # (TP, HW)
    v_feat = mm(p, feats)                        # (TP, DP)

    # ---- vision classifier (fused; result reused by the language branch)
    v_logits = mm(v_feat, v_cls_w_ref[...]) + v_cls_b_ref[...]     # (TP, CP)
    v_out_ref[0] = v_logits

    # ---- language branch: softmax-embed + 2-layer MLP + classifier
    l_in = mm(softmax(v_logits), emb_ref[...]) + lang_pos_ref[...]
    h = jnp.maximum(mm(l_in, l_w1_ref[...]) + l_b1_ref[...], 0.0)
    l_feat = mm(h, l_w2_ref[...]) + l_b2_ref[...]
    l_out_ref[0] = mm(l_feat, l_cls_w_ref[...]) + l_cls_b_ref[...]

    # ---- gated vision/language fusion + classifier
    gate = jax.nn.sigmoid(mm(l_feat, g_wl_ref[...]) +
                          mm(v_feat, g_wv_ref[...]) + g_b_ref[...])
    fused = gate * v_feat + (1.0 - gate) * l_feat
    vl_out_ref[0] = mm(fused, f_cls_w_ref[...]) + f_cls_b_ref[...]


# ---------------------------------------------------------------------------
# Glue (im2col, padding to lane/sublane-dense shapes, jit'd forward)
# ---------------------------------------------------------------------------

def _im2col_3x3(x_nhwc):
    """[B,H,W,Cin] -> [B, H*W, 9*Cin] 'same' 3x3 patches."""
    B, H, W, Cin = x_nhwc.shape
    xp = jnp.pad(x_nhwc, ((0, 0), (1, 1), (1, 1), (0, 0)))
    patches = [xp[:, dh:dh + H, dw:dw + W, :]
               for dh in range(3) for dw in range(3)]
    return jnp.concatenate(patches, axis=-1).reshape(B, H * W, 9 * Cin)


def _pad_to(x, shape, fill=0.0):
    pads = [(0, t - s) for s, t in zip(x.shape, shape)]
    return jnp.pad(x, pads, constant_values=fill)


def vision_language_reasoning(images_nchw, p):
    """Returns (l_res, v_res, vl_res) logits, each [B, T, num_classes]."""
    B, Cin, H, W = images_nchw.shape
    HW = H * W
    D = p["conv_w"].shape[-1]
    T = p["pos_q"].shape[0]
    C = p["v_cls_w"].shape[1]
    K = 9 * Cin

    DP = _round_up(D, LANE)
    CP = _round_up(C, LANE)
    KP = _round_up(K, LANE)
    TP = _round_up(T, SUBLANE)   # sublane-aligned sequence length

    f32, bf16 = jnp.float32, jnp.bfloat16

    x = jnp.transpose(images_nchw, (0, 2, 3, 1)).astype(f32)      # NHWC
    cols = _im2col_3x3(x)
    # TODO(synk): at real BUSNet sizes move im2col inside the kernel as 9
    # shifted accumulated matmuls; at H=W=16, Cin=4 cols is ~0.1 MiB so the
    # XLA-side build (fused under jit) is negligible.
    cols = _pad_to(cols, (B, HW, KP)).astype(bf16)

    conv_w = _pad_to(p["conv_w"].reshape(K, D), (KP, DP)).astype(bf16)
    conv_b = _pad_to(p["conv_b"].reshape(1, D), (1, DP)).astype(f32)
    pos_q = _pad_to(p["pos_q"], (TP, DP)).astype(bf16)
    v_cls_w = _pad_to(p["v_cls_w"], (DP, CP)).astype(bf16)
    # Padded (fake) classes get a very negative bias so the in-kernel softmax
    # over the class axis ignores them exactly.
    v_cls_b = _pad_to(p["v_cls_b"].reshape(1, C), (1, CP), fill=-1e30).astype(f32)
    emb = _pad_to(p["emb"], (CP, DP)).astype(bf16)
    lang_pos = _pad_to(p["lang_pos"], (TP, DP)).astype(f32)
    l_w1 = _pad_to(p["l_w1"], (DP, DP)).astype(bf16)
    l_b1 = _pad_to(p["l_b1"].reshape(1, D), (1, DP)).astype(f32)
    l_w2 = _pad_to(p["l_w2"], (DP, DP)).astype(bf16)
    l_b2 = _pad_to(p["l_b2"].reshape(1, D), (1, DP)).astype(f32)
    l_cls_w = _pad_to(p["l_cls_w"], (DP, CP)).astype(bf16)
    l_cls_b = _pad_to(p["l_cls_b"].reshape(1, C), (1, CP)).astype(f32)
    g_wl = _pad_to(p["g_wl"], (DP, DP)).astype(bf16)
    g_wv = _pad_to(p["g_wv"], (DP, DP)).astype(bf16)
    g_b = _pad_to(p["g_b"].reshape(1, D), (1, DP)).astype(f32)
    f_cls_w = _pad_to(p["f_cls_w"], (DP, CP)).astype(bf16)
    f_cls_b = _pad_to(p["f_cls_b"].reshape(1, C), (1, CP)).astype(f32)

    def full2d(shape):
        return pl.BlockSpec(shape, lambda b: (0, 0))

    out_sds = jax.ShapeDtypeStruct((B, TP, CP), f32)
    out_spec = pl.BlockSpec((1, TP, CP), lambda b: (b, 0, 0))

    l_logits, v_logits, vl_logits = pl.pallas_call(
        functools.partial(_fused_vlr_kernel, attn_scale=1.0 / math.sqrt(D)),
        grid=(B,),
        out_shape=(out_sds, out_sds, out_sds),
        in_specs=[
            pl.BlockSpec((1, HW, KP), lambda b: (b, 0, 0)),   # cols
            full2d((KP, DP)), full2d((1, DP)),                # conv w, b
            full2d((TP, DP)),                                 # pos_q
            full2d((DP, CP)), full2d((1, CP)),                # v_cls w, b
            full2d((CP, DP)), full2d((TP, DP)),               # emb, lang_pos
            full2d((DP, DP)), full2d((1, DP)),                # l_w1, l_b1
            full2d((DP, DP)), full2d((1, DP)),                # l_w2, l_b2
            full2d((DP, CP)), full2d((1, CP)),                # l_cls w, b
            full2d((DP, DP)), full2d((DP, DP)), full2d((1, DP)),  # gate
            full2d((DP, CP)), full2d((1, CP)),                # f_cls w, b
        ],
        out_specs=(out_spec, out_spec, out_spec),
        compiler_params=pltpu.CompilerParams(
            dimension_semantics=("parallel",)),   # v7x megacore over batch
    )(cols, conv_w, conv_b, pos_q, v_cls_w, v_cls_b, emb, lang_pos,
      l_w1, l_b1, l_w2, l_b2, l_cls_w, l_cls_b,
      g_wl, g_wv, g_b, f_cls_w, f_cls_b)

    return (l_logits[:, :T, :C], v_logits[:, :T, :C], vl_logits[:, :T, :C])


@functools.partial(jax.jit, static_argnames=("iter_size", "training"))
def busnet_finetune_forward(images, params, *, iter_size=1, training=False):
    """Mirrors busnet_finetune.forward: loop iter_size times, collect results;
    return the lists when training, else the last vl_res."""
    all_vl_res, all_l_res, all_v_res = [], [], []
    vl_res = None
    for _ in range(iter_size):
        l_res, v_res, vl_res = vision_language_reasoning(images, params)
        all_l_res.append(l_res)
        all_v_res.append(v_res)
        all_vl_res.append(vl_res)
    if training:
        return (all_vl_res, all_l_res, all_v_res)
    return vl_res


def init_params(key, cin=4, d_model=32, max_length=9, num_classes=10):
    ks = jax.random.split(key, 16)
    n = lambda k, shape, s=0.05: (s * jax.random.normal(k, shape)).astype(jnp.float32)
    z = lambda shape: jnp.zeros(shape, jnp.float32)
    return dict(
        conv_w=n(ks[0], (3, 3, cin, d_model)),
        conv_b=z((d_model,)),
        pos_q=n(ks[1], (max_length, d_model)),
        v_cls_w=n(ks[2], (d_model, num_classes)),
        v_cls_b=z((num_classes,)),
        emb=n(ks[3], (num_classes, d_model)),
        lang_pos=n(ks[4], (max_length, d_model)),
        l_w1=n(ks[5], (d_model, d_model)),
        l_b1=z((d_model,)),
        l_w2=n(ks[6], (d_model, d_model)),
        l_b2=z((d_model,)),
        l_cls_w=n(ks[7], (d_model, num_classes)),
        l_cls_b=z((num_classes,)),
        g_wl=n(ks[8], (d_model, d_model)),
        g_wv=n(ks[9], (d_model, d_model)),
        g_b=z((d_model,)),
        f_cls_w=n(ks[10], (d_model, num_classes)),
        f_cls_b=z((num_classes,)),
    )


if __name__ == "__main__":
    key = jax.random.PRNGKey(0)
    k_img, k_par = jax.random.split(key)

    # config: dataset_max_length=8 -> max_length=9, iter_size=1, eval mode
    B, CIN, H, W = 2, 4, 16, 16
    D_MODEL, MAX_LEN, NUM_CLASSES = 32, 9, 10

    images = jax.random.normal(k_img, (B, CIN, H, W), dtype=jnp.float32)  # NCHW
    params = init_params(k_par, cin=CIN, d_model=D_MODEL,
                         max_length=MAX_LEN, num_classes=NUM_CLASSES)

    vl_res = busnet_finetune_forward(images, params, iter_size=1, training=False)
    vl_res = jax.block_until_ready(vl_res)

    assert vl_res.shape == (B, MAX_LEN, NUM_CLASSES), vl_res.shape
    assert bool(jnp.all(jnp.isfinite(vl_res)))
    print("KERNEL_OK")
</pallas_src>

<mosaic_0001>
module attributes {stable_mosaic.version = 11 : i64} {
  func.func @_fused_vlr_kernel(%arg0: i32, %arg1: memref<1x256x128xbf16, #tpu.memory_space<vmem>>, %arg2: memref<128x128xbf16, #tpu.memory_space<vmem>>, %arg3: memref<1x128xf32, #tpu.memory_space<vmem>>, %arg4: memref<16x128xbf16, #tpu.memory_space<vmem>>, %arg5: memref<128x128xbf16, #tpu.memory_space<vmem>>, %arg6: memref<1x128xf32, #tpu.memory_space<vmem>>, %arg7: memref<128x128xbf16, #tpu.memory_space<vmem>>, %arg8: memref<16x128xf32, #tpu.memory_space<vmem>>, %arg9: memref<128x128xbf16, #tpu.memory_space<vmem>>, %arg10: memref<1x128xf32, #tpu.memory_space<vmem>>, %arg11: memref<128x128xbf16, #tpu.memory_space<vmem>>, %arg12: memref<1x128xf32, #tpu.memory_space<vmem>>, %arg13: memref<128x128xbf16, #tpu.memory_space<vmem>>, %arg14: memref<1x128xf32, #tpu.memory_space<vmem>>, %arg15: memref<128x128xbf16, #tpu.memory_space<vmem>>, %arg16: memref<128x128xbf16, #tpu.memory_space<vmem>>, %arg17: memref<1x128xf32, #tpu.memory_space<vmem>>, %arg18: memref<128x128xbf16, #tpu.memory_space<vmem>>, %arg19: memref<1x128xf32, #tpu.memory_space<vmem>>, %arg20: memref<1x16x128xf32, #tpu.memory_space<vmem>>, %arg21: memref<1x16x128xf32, #tpu.memory_space<vmem>>, %arg22: memref<1x16x128xf32, #tpu.memory_space<vmem>>) attributes {dimension_semantics = [#tpu.dimension_semantics<parallel>], iteration_bounds = array<i64: 2>, scalar_prefetch = 0 : i64, scratch_operands = 0 : i64, tpu.core_type = #tpu.core_type<tc>, window_params = [{transform_indices = @transform_0, window_bounds = array<i64: 1, 256, 128>}, {pipeline_mode = #tpu.pipeline_mode<synchronous>, transform_indices = @transform_1, window_bounds = array<i64: 128, 128>}, {pipeline_mode = #tpu.pipeline_mode<synchronous>, transform_indices = @transform_2, window_bounds = array<i64: 1, 128>}, {pipeline_mode = #tpu.pipeline_mode<synchronous>, transform_indices = @transform_3, window_bounds = array<i64: 16, 128>}, {pipeline_mode = #tpu.pipeline_mode<synchronous>, transform_indices = @transform_4, window_bounds = array<i64: 128, 128>}, {pipeline_mode = #tpu.pipeline_mode<synchronous>, transform_indices = @transform_5, window_bounds = array<i64: 1, 128>}, {pipeline_mode = #tpu.pipeline_mode<synchronous>, transform_indices = @transform_6, window_bounds = array<i64: 128, 128>}, {pipeline_mode = #tpu.pipeline_mode<synchronous>, transform_indices = @transform_7, window_bounds = array<i64: 16, 128>}, {pipeline_mode = #tpu.pipeline_mode<synchronous>, transform_indices = @transform_8, window_bounds = array<i64: 128, 128>}, {pipeline_mode = #tpu.pipeline_mode<synchronous>, transform_indices = @transform_9, window_bounds = array<i64: 1, 128>}, {pipeline_mode = #tpu.pipeline_mode<synchronous>, transform_indices = @transform_10, window_bounds = array<i64: 128, 128>}, {pipeline_mode = #tpu.pipeline_mode<synchronous>, transform_indices = @transform_11, window_bounds = array<i64: 1, 128>}, {pipeline_mode = #tpu.pipeline_mode<synchronous>, transform_indices = @transform_12, window_bounds = array<i64: 128, 128>}, {pipeline_mode = #tpu.pipeline_mode<synchronous>, transform_indices = @transform_13, window_bounds = array<i64: 1, 128>}, {pipeline_mode = #tpu.pipeline_mode<synchronous>, transform_indices = @transform_14, window_bounds = array<i64: 128, 128>}, {pipeline_mode = #tpu.pipeline_mode<synchronous>, transform_indices = @transform_15, window_bounds = array<i64: 128, 128>}, {pipeline_mode = #tpu.pipeline_mode<synchronous>, transform_indices = @transform_16, window_bounds = array<i64: 1, 128>}, {pipeline_mode = #tpu.pipeline_mode<synchronous>, transform_indices = @transform_17, window_bounds = array<i64: 128, 128>}, {pipeline_mode = #tpu.pipeline_mode<synchronous>, transform_indices = @transform_18, window_bounds = array<i64: 1, 128>}, {transform_indices = @transform_19, window_bounds = array<i64: 1, 16, 128>}, {transform_indices = @transform_20, window_bounds = array<i64: 1, 16, 128>}, {transform_indices = @transform_21, window_bounds = array<i64: 1, 16, 128>}]} {
    %c0 = arith.constant 0 : index
    %c0_0 = arith.constant 0 : index
    %c0_1 = arith.constant 0 : index
    %0 = vector.load %arg1[%c0, %c0_0, %c0_1] : memref<1x256x128xbf16, #tpu.memory_space<vmem>>, vector<1x256x128xbf16>
    %1 = vector.shape_cast %0 : vector<1x256x128xbf16> to vector<256x128xbf16>
    %c0_2 = arith.constant 0 : index
    %c0_3 = arith.constant 0 : index
    %2 = vector.load %arg2[%c0_2, %c0_3] : memref<128x128xbf16, #tpu.memory_space<vmem>>, vector<128x128xbf16>
    %cst = arith.constant dense<0.000000e+00> : vector<256x128xf32>
    %3 = tpu.matmul %1, %2, %cst {dimension_numbers = #tpu.dot_dimension_numbers<[1], [0], [0], [1], [0, 0, 1, 1], [], []>} : vector<256x128xbf16>, vector<128x128xbf16>, vector<256x128xf32> -> vector<256x128xf32>
    %c0_4 = arith.constant 0 : index
    %c0_5 = arith.constant 0 : index
    %4 = vector.load %arg3[%c0_4, %c0_5] : memref<1x128xf32, #tpu.memory_space<vmem>>, vector<1x128xf32>
    %5 = vector.broadcast %4 : vector<1x128xf32> to vector<256x128xf32>
    %6 = arith.addf %3, %5 : vector<256x128xf32>
    %cst_6 = arith.constant 0.000000e+00 : f32
    %7 = vector.broadcast %cst_6 : f32 to vector<256x128xf32>
    %8 = arith.maximumf %6, %7 : vector<256x128xf32>
    %c0_7 = arith.constant 0 : index
    %c0_8 = arith.constant 0 : index
    %9 = vector.load %arg4[%c0_7, %c0_8] : memref<16x128xbf16, #tpu.memory_space<vmem>>, vector<16x128xbf16>
    %10 = arith.truncf %8 : vector<256x128xf32> to vector<256x128xbf16>
    %cst_9 = arith.constant dense<0.000000e+00> : vector<16x256xf32>
    %11 = tpu.matmul %9, %10, %cst_9 {dimension_numbers = #tpu.dot_dimension_numbers<[1], [1], [0], [0], [0, 0, 1, 0], [], []>} : vector<16x128xbf16>, vector<256x128xbf16>, vector<16x256xf32> -> vector<16x256xf32>
    %cst_10 = arith.constant 0.176776692 : f32
    %12 = vector.broadcast %cst_10 : f32 to vector<16x256xf32>
    %13 = arith.mulf %11, %12 : vector<16x256xf32>
    %cst_11 = arith.constant dense<0xFF800000> : vector<16xf32>
    %14 = vector.multi_reduction <maximumf>, %13, %cst_11 [1] : vector<16x256xf32> to vector<16xf32>
    %15 = vector.shape_cast %14 : vector<16xf32> to vector<16x1xf32>
    %16 = vector.broadcast %15 : vector<16x1xf32> to vector<16x256xf32>
    %17 = arith.subf %13, %16 : vector<16x256xf32>
    %18 = math.exp %17 : vector<16x256xf32>
    %cst_12 = arith.constant dense<0.000000e+00> : vector<16xf32>
    %19 = vector.multi_reduction <add>, %18, %cst_12 [1] : vector<16x256xf32> to vector<16xf32>
    %20 = vector.shape_cast %19 : vector<16xf32> to vector<16x1xf32>
    %21 = tpu.reciprocal %20 {approx = true} : vector<16x1xf32> -> vector<16x1xf32>
    %22 = vector.broadcast %21 : vector<16x1xf32> to vector<16x256xf32>
    %23 = arith.mulf %18, %22 : vector<16x256xf32>
    %24 = arith.truncf %23 : vector<16x256xf32> to vector<16x256xbf16>
    %25 = arith.truncf %8 : vector<256x128xf32> to vector<256x128xbf16>
    %cst_13 = arith.constant dense<0.000000e+00> : vector<16x128xf32>
    %26 = tpu.matmul %24, %25, %cst_13 {dimension_numbers = #tpu.dot_dimension_numbers<[1], [0], [0], [1], [0, 0, 1, 1], [], []>} : vector<16x256xbf16>, vector<256x128xbf16>, vector<16x128xf32> -> vector<16x128xf32>
    %c0_14 = arith.constant 0 : index
    %c0_15 = arith.constant 0 : index
    %27 = vector.load %arg5[%c0_14, %c0_15] : memref<128x128xbf16, #tpu.memory_space<vmem>>, vector<128x128xbf16>
    %28 = arith.truncf %26 : vector<16x128xf32> to vector<16x128xbf16>
    %cst_16 = arith.constant dense<0.000000e+00> : vector<16x128xf32>
    %29 = tpu.matmul %28, %27, %cst_16 {dimension_numbers = #tpu.dot_dimension_numbers<[1], [0], [0], [1], [0, 0, 1, 1], [], []>} : vector<16x128xbf16>, vector<128x128xbf16>, vector<16x128xf32> -> vector<16x128xf32>
    %c0_17 = arith.constant 0 : index
    %c0_18 = arith.constant 0 : index
    %30 = vector.load %arg6[%c0_17, %c0_18] : memref<1x128xf32, #tpu.memory_space<vmem>>, vector<1x128xf32>
    %31 = vector.broadcast %30 : vector<1x128xf32> to vector<16x128xf32>
    %32 = arith.addf %29, %31 : vector<16x128xf32>
    %c0_19 = arith.constant 0 : index
    %c0_20 = arith.constant 0 : index
    %c0_21 = arith.constant 0 : index
    %33 = vector.load %arg21[%c0_19, %c0_20, %c0_21] : memref<1x16x128xf32, #tpu.memory_space<vmem>>, vector<1x16x128xf32>
    %34 = vector.shape_cast %33 : vector<1x16x128xf32> to vector<16x128xf32>
    %35 = vector.shape_cast %32 : vector<16x128xf32> to vector<1x16x128xf32>
    tpu.vector_store %arg21[%c0_19, %c0_20, %c0_21], %35 {strides = array<i32>} : memref<1x16x128xf32, #tpu.memory_space<vmem>>, vector<1x16x128xf32>,
    %cst_22 = arith.constant dense<0xFF800000> : vector<16xf32>
    %36 = vector.multi_reduction <maximumf>, %32, %cst_22 [1] : vector<16x128xf32> to vector<16xf32>
    %37 = vector.shape_cast %36 : vector<16xf32> to vector<16x1xf32>
    %38 = vector.broadcast %37 : vector<16x1xf32> to vector<16x128xf32>
    %39 = arith.subf %32, %38 : vector<16x128xf32>
    %40 = math.exp %39 : vector<16x128xf32>
    %cst_23 = arith.constant dense<0.000000e+00> : vector<16xf32>
    %41 = vector.multi_reduction <add>, %40, %cst_23 [1] : vector<16x128xf32> to vector<16xf32>
    %42 = vector.shape_cast %41 : vector<16xf32> to vector<16x1xf32>
    %43 = tpu.reciprocal %42 {approx = true} : vector<16x1xf32> -> vector<16x1xf32>
    %44 = vector.broadcast %43 : vector<16x1xf32> to vector<16x128xf32>
    %45 = arith.mulf %40, %44 : vector<16x128xf32>
    %c0_24 = arith.constant 0 : index
    %c0_25 = arith.constant 0 : index
    %46 = vector.load %arg7[%c0_24, %c0_25] : memref<128x128xbf16, #tpu.memory_space<vmem>>, vector<128x128xbf16>
    %47 = arith.truncf %45 : vector<16x128xf32> to vector<16x128xbf16>
    %cst_26 = arith.constant dense<0.000000e+00> : vector<16x128xf32>
    %48 = tpu.matmul %47, %46, %cst_26 {dimension_numbers = #tpu.dot_dimension_numbers<[1], [0], [0], [1], [0, 0, 1, 1], [], []>} : vector<16x128xbf16>, vector<128x128xbf16>, vector<16x128xf32> -> vector<16x128xf32>
    %c0_27 = arith.constant 0 : index
    %c0_28 = arith.constant 0 : index
    %49 = vector.load %arg8[%c0_27, %c0_28] : memref<16x128xf32, #tpu.memory_space<vmem>>, vector<16x128xf32>
    %50 = arith.addf %48, %49 : vector<16x128xf32>
    %c0_29 = arith.constant 0 : index
    %c0_30 = arith.constant 0 : index
    %51 = vector.load %arg9[%c0_29, %c0_30] : memref<128x128xbf16, #tpu.memory_space<vmem>>, vector<128x128xbf16>
    %52 = arith.truncf %50 : vector<16x128xf32> to vector<16x128xbf16>
    %cst_31 = arith.constant dense<0.000000e+00> : vector<16x128xf32>
    %53 = tpu.matmul %52, %51, %cst_31 {dimension_numbers = #tpu.dot_dimension_numbers<[1], [0], [0], [1], [0, 0, 1, 1], [], []>} : vector<16x128xbf16>, vector<128x128xbf16>, vector<16x128xf32> -> vector<16x128xf32>
    %c0_32 = arith.constant 0 : index
    %c0_33 = arith.constant 0 : index
    %54 = vector.load %arg10[%c0_32, %c0_33] : memref<1x128xf32, #tpu.memory_space<vmem>>, vector<1x128xf32>
    %55 = vector.broadcast %54 : vector<1x128xf32> to vector<16x128xf32>
    %56 = arith.addf %53, %55 : vector<16x128xf32>
    %cst_34 = arith.constant 0.000000e+00 : f32
    %57 = vector.broadcast %cst_34 : f32 to vector<16x128xf32>
    %58 = arith.maximumf %56, %57 : vector<16x128xf32>
    %c0_35 = arith.constant 0 : index
    %c0_36 = arith.constant 0 : index
    %59 = vector.load %arg11[%c0_35, %c0_36] : memref<128x128xbf16, #tpu.memory_space<vmem>>, vector<128x128xbf16>
    %60 = arith.truncf %58 : vector<16x128xf32> to vector<16x128xbf16>
    %cst_37 = arith.constant dense<0.000000e+00> : vector<16x128xf32>
    %61 = tpu.matmul %60, %59, %cst_37 {dimension_numbers = #tpu.dot_dimension_numbers<[1], [0], [0], [1], [0, 0, 1, 1], [], []>} : vector<16x128xbf16>, vector<128x128xbf16>, vector<16x128xf32> -> vector<16x128xf32>
    %c0_38 = arith.constant 0 : index
    %c0_39 = arith.constant 0 : index
    %62 = vector.load %arg12[%c0_38, %c0_39] : memref<1x128xf32, #tpu.memory_space<vmem>>, vector<1x128xf32>
    %63 = vector.broadcast %62 : vector<1x128xf32> to vector<16x128xf32>
    %64 = arith.addf %61, %63 : vector<16x128xf32>
    %c0_40 = arith.constant 0 : index
    %c0_41 = arith.constant 0 : index
    %65 = vector.load %arg13[%c0_40, %c0_41] : memref<128x128xbf16, #tpu.memory_space<vmem>>, vector<128x128xbf16>
    %66 = arith.truncf %64 : vector<16x128xf32> to vector<16x128xbf16>
    %cst_42 = arith.constant dense<0.000000e+00> : vector<16x128xf32>
    %67 = tpu.matmul %66, %65, %cst_42 {dimension_numbers = #tpu.dot_dimension_numbers<[1], [0], [0], [1], [0, 0, 1, 1], [], []>} : vector<16x128xbf16>, vector<128x128xbf16>, vector<16x128xf32> -> vector<16x128xf32>
    %c0_43 = arith.constant 0 : index
    %c0_44 = arith.constant 0 : index
    %68 = vector.load %arg14[%c0_43, %c0_44] : memref<1x128xf32, #tpu.memory_space<vmem>>, vector<1x128xf32>
    %69 = vector.broadcast %68 : vector<1x128xf32> to vector<16x128xf32>
    %70 = arith.addf %67, %69 : vector<16x128xf32>
    %c0_45 = arith.constant 0 : index
    %c0_46 = arith.constant 0 : index
    %c0_47 = arith.constant 0 : index
    %71 = vector.load %arg20[%c0_45, %c0_46, %c0_47] : memref<1x16x128xf32, #tpu.memory_space<vmem>>, vector<1x16x128xf32>
    %72 = vector.shape_cast %71 : vector<1x16x128xf32> to vector<16x128xf32>
    %73 = vector.shape_cast %70 : vector<16x128xf32> to vector<1x16x128xf32>
    tpu.vector_store %arg20[%c0_45, %c0_46, %c0_47], %73 {strides = array<i32>} : memref<1x16x128xf32, #tpu.memory_space<vmem>>, vector<1x16x128xf32>,
    %c0_48 = arith.constant 0 : index
    %c0_49 = arith.constant 0 : index
    %74 = vector.load %arg15[%c0_48, %c0_49] : memref<128x128xbf16, #tpu.memory_space<vmem>>, vector<128x128xbf16>
    %75 = arith.truncf %64 : vector<16x128xf32> to vector<16x128xbf16>
    %cst_50 = arith.constant dense<0.000000e+00> : vector<16x128xf32>
    %76 = tpu.matmul %75, %74, %cst_50 {dimension_numbers = #tpu.dot_dimension_numbers<[1], [0], [0], [1], [0, 0, 1, 1], [], []>} : vector<16x128xbf16>, vector<128x128xbf16>, vector<16x128xf32> -> vector<16x128xf32>
    %c0_51 = arith.constant 0 : index
    %c0_52 = arith.constant 0 : index
    %77 = vector.load %arg16[%c0_51, %c0_52] : memref<128x128xbf16, #tpu.memory_space<vmem>>, vector<128x128xbf16>
    %78 = arith.truncf %26 : vector<16x128xf32> to vector<16x128xbf16>
    %cst_53 = arith.constant dense<0.000000e+00> : vector<16x128xf32>
    %79 = tpu.matmul %78, %77, %cst_53 {dimension_numbers = #tpu.dot_dimension_numbers<[1], [0], [0], [1], [0, 0, 1, 1], [], []>} : vector<16x128xbf16>, vector<128x128xbf16>, vector<16x128xf32> -> vector<16x128xf32>
    %80 = arith.addf %76, %79 : vector<16x128xf32>
    %c0_54 = arith.constant 0 : index
    %c0_55 = arith.constant 0 : index
    %81 = vector.load %arg17[%c0_54, %c0_55] : memref<1x128xf32, #tpu.memory_space<vmem>>, vector<1x128xf32>
    %82 = vector.broadcast %81 : vector<1x128xf32> to vector<16x128xf32>
    %83 = arith.addf %80, %82 : vector<16x128xf32>
    %84 = arith.negf %83 : vector<16x128xf32>
    %85 = math.exp %84 : vector<16x128xf32>
    %cst_56 = arith.constant 1.000000e+00 : f32
    %86 = vector.broadcast %cst_56 : f32 to vector<16x128xf32>
    %87 = arith.addf %86, %85 : vector<16x128xf32>
    %88 = arith.divf %86, %87 : vector<16x128xf32>
    %89 = arith.mulf %88, %26 : vector<16x128xf32>
    %cst_57 = arith.constant 1.000000e+00 : f32
    %90 = vector.broadcast %cst_57 : f32 to vector<16x128xf32>
    %91 = arith.subf %90, %88 : vector<16x128xf32>
    %92 = arith.mulf %91, %64 : vector<16x128xf32>
    %93 = arith.addf %89, %92 : vector<16x128xf32>
    %c0_58 = arith.constant 0 : index
    %c0_59 = arith.constant 0 : index
    %94 = vector.load %arg18[%c0_58, %c0_59] : memref<128x128xbf16, #tpu.memory_space<vmem>>, vector<128x128xbf16>
    %95 = arith.truncf %93 : vector<16x128xf32> to vector<16x128xbf16>
    %cst_60 = arith.constant dense<0.000000e+00> : vector<16x128xf32>
    %96 = tpu.matmul %95, %94, %cst_60 {dimension_numbers = #tpu.dot_dimension_numbers<[1], [0], [0], [1], [0, 0, 1, 1], [], []>} : vector<16x128xbf16>, vector<128x128xbf16>, vector<16x128xf32> -> vector<16x128xf32>
    %c0_61 = arith.constant 0 : index
    %c0_62 = arith.constant 0 : index
    %97 = vector.load %arg19[%c0_61, %c0_62] : memref<1x128xf32, #tpu.memory_space<vmem>>, vector<1x128xf32>
    %98 = vector.broadcast %97 : vector<1x128xf32> to vector<16x128xf32>
    %99 = arith.addf %96, %98 : vector<16x128xf32>
    %c0_63 = arith.constant 0 : index
    %c0_64 = arith.constant 0 : index
    %c0_65 = arith.constant 0 : index
    %100 = vector.load %arg22[%c0_63, %c0_64, %c0_65] : memref<1x16x128xf32, #tpu.memory_space<vmem>>, vector<1x16x128xf32>
    %101 = vector.shape_cast %100 : vector<1x16x128xf32> to vector<16x128xf32>
    %102 = vector.shape_cast %99 : vector<16x128xf32> to vector<1x16x128xf32>
    tpu.vector_store %arg22[%c0_63, %c0_64, %c0_65], %102 {strides = array<i32>} : memref<1x16x128xf32, #tpu.memory_space<vmem>>, vector<1x16x128xf32>,
    return
  }
  func.func @transform_0(%arg0: i32) -> (i32, i32, i32) {
    %c0_i32 = arith.constant 0 : i32
    %c0_i32_0 = arith.constant 0 : i32
    %c0_i32_1 = arith.constant 0 : i32
    return %arg0, %c0_i32, %c0_i32_0 : i32, i32, i32
  }
  func.func @transform_1(%arg0: i32) -> (i32, i32) {
    %c0_i32 = arith.constant 0 : i32
    %c0_i32_0 = arith.constant 0 : i32
    %c0_i32_1 = arith.constant 0 : i32
    return %c0_i32, %c0_i32_0 : i32, i32
  }
  func.func @transform_2(%arg0: i32) -> (i32, i32) {
    %c0_i32 = arith.constant 0 : i32
    %c0_i32_0 = arith.constant 0 : i32
    %c0_i32_1 = arith.constant 0 : i32
    return %c0_i32, %c0_i32_0 : i32, i32
  }
  func.func @transform_3(%arg0: i32) -> (i32, i32) {
    %c0_i32 = arith.constant 0 : i32
    %c0_i32_0 = arith.constant 0 : i32
    %c0_i32_1 = arith.constant 0 : i32
    return %c0_i32, %c0_i32_0 : i32, i32
  }
  func.func @transform_4(%arg0: i32) -> (i32, i32) {
    %c0_i32 = arith.constant 0 : i32
    %c0_i32_0 = arith.constant 0 : i32
    %c0_i32_1 = arith.constant 0 : i32
    return %c0_i32, %c0_i32_0 : i32, i32
  }
  func.func @transform_5(%arg0: i32) -> (i32, i32) {
    %c0_i32 = arith.constant 0 : i32
    %c0_i32_0 = arith.constant 0 : i32
    %c0_i32_1 = arith.constant 0 : i32
    return %c0_i32, %c0_i32_0 : i32, i32
  }
  func.func @transform_6(%arg0: i32) -> (i32, i32) {
    %c0_i32 = arith.constant 0 : i32
    %c0_i32_0 = arith.constant 0 : i32
    %c0_i32_1 = arith.constant 0 : i32
    return %c0_i32, %c0_i32_0 : i32, i32
  }
  func.func @transform_7(%arg0: i32) -> (i32, i32) {
    %c0_i32 = arith.constant 0 : i32
    %c0_i32_0 = arith.constant 0 : i32
    %c0_i32_1 = arith.constant 0 : i32
    return %c0_i32, %c0_i32_0 : i32, i32
  }
  func.func @transform_8(%arg0: i32) -> (i32, i32) {
    %c0_i32 = arith.constant 0 : i32
    %c0_i32_0 = arith.constant 0 : i32
    %c0_i32_1 = arith.constant 0 : i32
    return %c0_i32, %c0_i32_0 : i32, i32
  }
  func.func @transform_9(%arg0: i32) -> (i32, i32) {
    %c0_i32 = arith.constant 0 : i32
    %c0_i32_0 = arith.constant 0 : i32
    %c0_i32_1 = arith.constant 0 : i32
    return %c0_i32, %c0_i32_0 : i32, i32
  }
  func.func @transform_10(%arg0: i32) -> (i32, i32) {
    %c0_i32 = arith.constant 0 : i32
    %c0_i32_0 = arith.constant 0 : i32
    %c0_i32_1 = arith.constant 0 : i32
    return %c0_i32, %c0_i32_0 : i32, i32
  }
  func.func @transform_11(%arg0: i32) -> (i32, i32) {
    %c0_i32 = arith.constant 0 : i32
    %c0_i32_0 = arith.constant 0 : i32
    %c0_i32_1 = arith.constant 0 : i32
    return %c0_i32, %c0_i32_0 : i32, i32
  }
  func.func @transform_12(%arg0: i32) -> (i32, i32) {
    %c0_i32 = arith.constant 0 : i32
    %c0_i32_0 = arith.constant 0 : i32
    %c0_i32_1 = arith.constant 0 : i32
    return %c0_i32, %c0_i32_0 : i32, i32
  }
  func.func @transform_13(%arg0: i32) -> (i32, i32) {
    %c0_i32 = arith.constant 0 : i32
    %c0_i32_0 = arith.constant 0 : i32
    %c0_i32_1 = arith.constant 0 : i32
    return %c0_i32, %c0_i32_0 : i32, i32
  }
  func.func @transform_14(%arg0: i32) -> (i32, i32) {
    %c0_i32 = arith.constant 0 : i32
    %c0_i32_0 = arith.constant 0 : i32
    %c0_i32_1 = arith.constant 0 : i32
    return %c0_i32, %c0_i32_0 : i32, i32
  }
  func.func @transform_15(%arg0: i32) -> (i32, i32) {
    %c0_i32 = arith.constant 0 : i32
    %c0_i32_0 = arith.constant 0 : i32
    %c0_i32_1 = arith.constant 0 : i32
    return %c0_i32, %c0_i32_0 : i32, i32
  }
  func.func @transform_16(%arg0: i32) -> (i32, i32) {
    %c0_i32 = arith.constant 0 : i32
    %c0_i32_0 = arith.constant 0 : i32
    %c0_i32_1 = arith.constant 0 : i32
    return %c0_i32, %c0_i32_0 : i32, i32
  }
  func.func @transform_17(%arg0: i32) -> (i32, i32) {
    %c0_i32 = arith.constant 0 : i32
    %c0_i32_0 = arith.constant 0 : i32
    %c0_i32_1 = arith.constant 0 : i32
    return %c0_i32, %c0_i32_0 : i32, i32
  }
  func.func @transform_18(%arg0: i32) -> (i32, i32) {
    %c0_i32 = arith.constant 0 : i32
    %c0_i32_0 = arith.constant 0 : i32
    %c0_i32_1 = arith.constant 0 : i32
    return %c0_i32, %c0_i32_0 : i32, i32
  }
  func.func @transform_19(%arg0: i32) -> (i32, i32, i32) {
    %c0_i32 = arith.constant 0 : i32
    %c0_i32_0 = arith.constant 0 : i32
    %c0_i32_1 = arith.constant 0 : i32
    return %arg0, %c0_i32, %c0_i32_0 : i32, i32, i32
  }
  func.func @transform_20(%arg0: i32) -> (i32, i32, i32) {
    %c0_i32 = arith.constant 0 : i32
    %c0_i32_0 = arith.constant 0 : i32
    %c0_i32_1 = arith.constant 0 : i32
    return %arg0, %c0_i32, %c0_i32_0 : i32, i32, i32
  }
  func.func @transform_21(%arg0: i32) -> (i32, i32, i32) {
    %c0_i32 = arith.constant 0 : i32
    %c0_i32_0 = arith.constant 0 : i32
    %c0_i32_1 = arith.constant 0 : i32
    return %arg0, %c0_i32, %c0_i32_0 : i32, i32, i32
  }
}

</mosaic_0001>

<llo_original>
// kernel: busnet_finetune_forward.1
$region0: #{busnet_finetune_forward.1}
  #allocation0 [shape = 'u32[]', space=smem, size = 0x4, offset = 0x4, fixed_abs, tag = 'smem constant byte address 0x4 - core index']
  #allocation1 [shape = 'u32[72,128]{1,0:T(1,128)}', space=vmem, size = 0x9000, scoped, tag = 'internal scratch']
  %s0 = inlined_call_operand.vmem [shape: bf16[2,256,128], index: 0, kind: input, shape index: {}]
  %s1 = inlined_call_operand.vmem [shape: bf16[128,128], index: 1, kind: input, shape index: {}]
  %s2 = inlined_call_operand.vmem [shape: f32[1,128], index: 2, kind: input, shape index: {}]
  %s3 = inlined_call_operand.vmem [shape: bf16[16,128], index: 3, kind: input, shape index: {}]
  %s4 = inlined_call_operand.vmem [shape: bf16[128,128], index: 4, kind: input, shape index: {}]
  %s5 = inlined_call_operand.vmem [shape: f32[1,128], index: 5, kind: input, shape index: {}]
  %s6 = inlined_call_operand.vmem [shape: bf16[128,128], index: 6, kind: input, shape index: {}]
  %s7 = inlined_call_operand.vmem [shape: f32[16,128], index: 7, kind: input, shape index: {}]
  %s8 = inlined_call_operand.vmem [shape: bf16[128,128], index: 8, kind: input, shape index: {}]
  %s9 = inlined_call_operand.vmem [shape: f32[1,128], index: 9, kind: input, shape index: {}]
  %s10 = inlined_call_operand.vmem [shape: bf16[128,128], index: 10, kind: input, shape index: {}]
  %s11 = inlined_call_operand.vmem [shape: f32[1,128], index: 11, kind: input, shape index: {}]
  %s12 = inlined_call_operand.vmem [shape: bf16[128,128], index: 12, kind: input, shape index: {}]
  %s13 = inlined_call_operand.vmem [shape: f32[1,128], index: 13, kind: input, shape index: {}]
  %s14 = inlined_call_operand.vmem [shape: bf16[128,128], index: 14, kind: input, shape index: {}]
  %s15 = inlined_call_operand.vmem [shape: bf16[128,128], index: 15, kind: input, shape index: {}]
  %s16 = inlined_call_operand.vmem [shape: f32[1,128], index: 16, kind: input, shape index: {}]
  %s17 = inlined_call_operand.vmem [shape: bf16[128,128], index: 17, kind: input, shape index: {}]
  %s18 = inlined_call_operand.vmem [shape: f32[1,128], index: 18, kind: input, shape index: {}]
  %s19 = inlined_call_operand.hbm [shape: f32[2,16,128], index: 19, kind: output, shape index: {0}]
  %s20 = inlined_call_operand.hbm [shape: f32[2,16,128], index: 20, kind: output, shape index: {1}]
  %s21 = inlined_call_operand.vmem [shape: f32[2,16,128], index: 21, kind: output, shape index: {2}]
  %22 = xla_tuple %s19, %s20, %s21
  %s23 = sld [smem:[#allocation0]]
  $region125: #{busnet_finetune_forward.1} parent=0
    _
  %s25 = ssub.s32 1, %s23
  %s26 = scalar_select 0, %s25, %s23
  $region1: #{busnet_finetune_forward.1} parent=0
    #allocation2 [shape = 'u8[16384]{0}', space=vmem, size = 0x4000, scoped, tag = 'output window, operand 0']
    #allocation3 [shape = 's32[2]{0}', space=sflag, size = 0x8, scoped, tag = 'scoped memory for busnet_finetune_forward.1']
    #allocation4 [shape = 'u8[16384]{0}', space=vmem, size = 0x4000, scoped, tag = 'output window, operand 1']
    #allocation5 [shape = 's32[2]{0}', space=sflag, size = 0x8, scoped, tag = 'scoped memory for busnet_finetune_forward.1']
    %27 = vsyncpa [#allocation3], 0
    %s28 = scalar_lea.sflag [#allocation3], 1
    %29 = vsyncpa %s28, 0
    %30 = vsyncpa [#allocation5], 0
    %s31 = scalar_lea.sflag [#allocation5], 1
    %32 = vsyncpa %s31, 0
    loop: start=0, step=1, limit=4
    $region2: #{busnet_finetune_forward.1} parent=1 // loop_pre_header
      _
    $region3: #{busnet_finetune_forward.1} parent=1 // loop_header
      %s34 = sphi 0, %s38
      %p35 = scmp.ge.s32.totalorder %s34, 4
      %s44 = sphi 0, %s46
      %s47 = sphi 0, %s44
      %s48 = sphi 0, %s47
      %s64 = sphi 0, %s48
      %s68 = sphi 0, %s68
      %s70 = sphi 0, %s68
      %s71 = sphi 0, %s70
      %s85 = sphi 0, %s71
      %s89 = sphi 0, %s89
      %s91 = sphi 0, %s89
      %s92 = sphi 0, %s91
      %s106 = sphi 0, %s92
      %s110 = sphi 0, %s110
      %s112 = sphi 0, %s110
      %s113 = sphi 0, %s112
      %s127 = sphi 0, %s113
      %s131 = sphi 0, %s131
      %s133 = sphi 0, %s131
      %s134 = sphi 0, %s133
      %s148 = sphi 0, %s134
      %s152 = sphi 0, %s152
      %s154 = sphi 0, %s152
      %s155 = sphi 0, %s154
      %s169 = sphi 0, %s155
      %s173 = sphi 0, %s173
      %s175 = sphi 0, %s173
      %s176 = sphi 0, %s175
      %s190 = sphi 0, %s176
      %s194 = sphi 0, %s194
      %s196 = sphi 0, %s194
      %s197 = sphi 0, %s196
      %s211 = sphi 0, %s197
      %s215 = sphi 0, %s215
      %s217 = sphi 0, %s215
      %s218 = sphi 0, %s217
      %s232 = sphi 0, %s218
      %s236 = sphi 0, %s236
      %s238 = sphi 0, %s236
      %s239 = sphi 0, %s238
      %s253 = sphi 0, %s239
      %s257 = sphi 0, %s257
      %s259 = sphi 0, %s257
      %s260 = sphi 0, %s259
      %s274 = sphi 0, %s260
      %s278 = sphi 0, %s278
      %s280 = sphi 0, %s278
      %s281 = sphi 0, %s280
      %s295 = sphi 0, %s281
      %s299 = sphi 0, %s299
      %s301 = sphi 0, %s299
      %s302 = sphi 0, %s301
      %s316 = sphi 0, %s302
      %s320 = sphi 0, %s320
      %s322 = sphi 0, %s320
      %s323 = sphi 0, %s322
      %s337 = sphi 0, %s323
      %s341 = sphi 0, %s341
      %s343 = sphi 0, %s341
      %s344 = sphi 0, %s343
      %s358 = sphi 0, %s344
      %s362 = sphi 0, %s362
      %s364 = sphi 0, %s362
      %s365 = sphi 0, %s364
      %s379 = sphi 0, %s365
      %s383 = sphi 0, %s383
      %s385 = sphi 0, %s383
      %s386 = sphi 0, %s385
      %s400 = sphi 0, %s386
      %s404 = sphi 0, %s404
      %s406 = sphi 0, %s404
      %s407 = sphi 0, %s406
      %s421 = sphi 0, %s407
      %s425 = sphi 0, %s425
      %s427 = sphi 0, %s425
      %s428 = sphi 0, %s427
      %s442 = sphi 0, %s428
      %s448 = sphi 0, %s450
      %s451 = sphi 0, %s448
      %s452 = sphi 0, %s451
      %s468 = sphi 0, %s452
      %s474 = sphi 0, %s476
      %s477 = sphi 0, %s474
      %s478 = sphi 0, %s477
      %s494 = sphi 0, %s478
      %s500 = sphi 0, %s502
      %s503 = sphi 0, %s500
      %s504 = sphi 0, %s503
      %s520 = sphi 0, %s504
    $region4: #{busnet_finetune_forward.1} parent=1 // loop_header_branch
      %37 = sbr.rel (%p35) target = $region8
    $region5: #{busnet_finetune_forward.1} parent=1 // loop_body
      %s39 = ssub.s32 %s34, 1
      %s40 = ssub.s32 %s34, 2
      %s41 = sadd.s32 %s34, 1
      %s42 = ssub.s32 %s34, %s41
      %p43 = scmp.eq.s32.totalorder %s42, 0
      %s45 = sadd.s32 %s44, 1
      %s46 = scalar_select %p43, %s44, %s45
      %p49 = pneg %p43
      %p50 = scmp.eq.s32.totalorder %s34, 1
      %p51 = por %p49, %p50
      %p52 = scmp.ne.s32.totalorder %s44, %s47
      %p53 = scmp.eq.s32.totalorder %s34, 0
      %p54 = por %p52, %p53
      %p55 = scmp.ne.s32.totalorder %s44, %s47
      %p56 = scmp.eq.s32.totalorder %s39, 1
      %p57 = por %p55, %p56
      %p58 = scmp.ne.s32.totalorder %s47, %s48
      %p59 = scmp.eq.s32.totalorder %s39, 0
      %p60 = por %p58, %p59
      %p61 = scmp.ne.s32.totalorder %s47, %s48
      %p62 = scmp.eq.s32.totalorder %s40, 1
      %p63 = por %p61, %p62
      %p65 = scmp.ne.s32.totalorder %s48, %s64
      %p66 = scmp.eq.s32.totalorder %s40, 0
      %p67 = por %p65, %p66
      %s69 = sadd.s32 %s68, 1
      %p72 = scmp.eq.s32.totalorder %s34, 1
      %p73 = scmp.ne.s32.totalorder %s68, %s70
      %p74 = scmp.eq.s32.totalorder %s34, 0
      %p75 = por %p73, %p74
      %p76 = scmp.ne.s32.totalorder %s68, %s70
      %p77 = scmp.eq.s32.totalorder %s39, 1
      %p78 = por %p76, %p77
      %p79 = scmp.ne.s32.totalorder %s70, %s71
      %p80 = scmp.eq.s32.totalorder %s39, 0
      %p81 = por %p79, %p80
      %p82 = scmp.ne.s32.totalorder %s70, %s71
      %p83 = scmp.eq.s32.totalorder %s40, 1
      %p84 = por %p82, %p83
      %p86 = scmp.ne.s32.totalorder %s71, %s85
      %p87 = scmp.eq.s32.totalorder %s40, 0
      %p88 = por %p86, %p87
      %s90 = sadd.s32 %s89, 1
      %p93 = scmp.eq.s32.totalorder %s34, 1
      %p94 = scmp.ne.s32.totalorder %s89, %s91
      %p95 = scmp.eq.s32.totalorder %s34, 0
      %p96 = por %p94, %p95
      %p97 = scmp.ne.s32.totalorder %s89, %s91
      %p98 = scmp.eq.s32.totalorder %s39, 1
      %p99 = por %p97, %p98
      %p100 = scmp.ne.s32.totalorder %s91, %s92
      %p101 = scmp.eq.s32.totalorder %s39, 0
      %p102 = por %p100, %p101
      %p103 = scmp.ne.s32.totalorder %s91, %s92
      %p104 = scmp.eq.s32.totalorder %s40, 1
      %p105 = por %p103, %p104
      %p107 = scmp.ne.s32.totalorder %s92, %s106
      %p108 = scmp.eq.s32.totalorder %s40, 0
      %p109 = por %p107, %p108
      %s111 = sadd.s32 %s110, 1
      %p114 = scmp.eq.s32.totalorder %s34, 1
      %p115 = scmp.ne.s32.totalorder %s110, %s112
      %p116 = scmp.eq.s32.totalorder %s34, 0
      %p117 = por %p115, %p116
      %p118 = scmp.ne.s32.totalorder %s110, %s112
      %p119 = scmp.eq.s32.totalorder %s39, 1
      %p120 = por %p118, %p119
      %p121 = scmp.ne.s32.totalorder %s112, %s113
      %p122 = scmp.eq.s32.totalorder %s39, 0
      %p123 = por %p121, %p122
      %p124 = scmp.ne.s32.totalorder %s112, %s113
      %p125 = scmp.eq.s32.totalorder %s40, 1
      %p126 = por %p124, %p125
      %p128 = scmp.ne.s32.totalorder %s113, %s127
      %p129 = scmp.eq.s32.totalorder %s40, 0
      %p130 = por %p128, %p129
      %s132 = sadd.s32 %s131, 1
      %p135 = scmp.eq.s32.totalorder %s34, 1
      %p136 = scmp.ne.s32.totalorder %s131, %s133
      %p137 = scmp.eq.s32.totalorder %s34, 0
      %p138 = por %p136, %p137
      %p139 = scmp.ne.s32.totalorder %s131, %s133
      %p140 = scmp.eq.s32.totalorder %s39, 1
      %p141 = por %p139, %p140
      %p142 = scmp.ne.s32.totalorder %s133, %s134
      %p143 = scmp.eq.s32.totalorder %s39, 0
      %p144 = por %p142, %p143
      %p145 = scmp.ne.s32.totalorder %s133, %s134
      %p146 = scmp.eq.s32.totalorder %s40, 1
      %p147 = por %p145, %p146
      %p149 = scmp.ne.s32.totalorder %s134, %s148
      %p150 = scmp.eq.s32.totalorder %s40, 0
      %p151 = por %p149, %p150
      %s153 = sadd.s32 %s152, 1
      %p156 = scmp.eq.s32.totalorder %s34, 1
      %p157 = scmp.ne.s32.totalorder %s152, %s154
      %p158 = scmp.eq.s32.totalorder %s34, 0
      %p159 = por %p157, %p158
      %p160 = scmp.ne.s32.totalorder %s152, %s154
      %p161 = scmp.eq.s32.totalorder %s39, 1
      %p162 = por %p160, %p161
      %p163 = scmp.ne.s32.totalorder %s154, %s155
      %p164 = scmp.eq.s32.totalorder %s39, 0
      %p165 = por %p163, %p164
      %p166 = scmp.ne.s32.totalorder %s154, %s155
      %p167 = scmp.eq.s32.totalorder %s40, 1
      %p168 = por %p166, %p167
      %p170 = scmp.ne.s32.totalorder %s155, %s169
      %p171 = scmp.eq.s32.totalorder %s40, 0
      %p172 = por %p170, %p171
      %s174 = sadd.s32 %s173, 1
      %p177 = scmp.eq.s32.totalorder %s34, 1
      %p178 = scmp.ne.s32.totalorder %s173, %s175
      %p179 = scmp.eq.s32.totalorder %s34, 0
      %p180 = por %p178, %p179
      %p181 = scmp.ne.s32.totalorder %s173, %s175
      %p182 = scmp.eq.s32.totalorder %s39, 1
      %p183 = por %p181, %p182
      %p184 = scmp.ne.s32.totalorder %s175, %s176
      %p185 = scmp.eq.s32.totalorder %s39, 0
      %p186 = por %p184, %p185
      %p187 = scmp.ne.s32.totalorder %s175, %s176
      %p188 = scmp.eq.s32.totalorder %s40, 1
      %p189 = por %p187, %p188
      %p191 = scmp.ne.s32.totalorder %s176, %s190
      %p192 = scmp.eq.s32.totalorder %s40, 0
      %p193 = por %p191, %p192
      %s195 = sadd.s32 %s194, 1
      %p198 = scmp.eq.s32.totalorder %s34, 1
      %p199 = scmp.ne.s32.totalorder %s194, %s196
      %p200 = scmp.eq.s32.totalorder %s34, 0
      %p201 = por %p199, %p200
      %p202 = scmp.ne.s32.totalorder %s194, %s196
      %p203 = scmp.eq.s32.totalorder %s39, 1
      %p204 = por %p202, %p203
      %p205 = scmp.ne.s32.totalorder %s196, %s197
      %p206 = scmp.eq.s32.totalorder %s39, 0
      %p207 = por %p205, %p206
      %p208 = scmp.ne.s32.totalorder %s196, %s197
      %p209 = scmp.eq.s32.totalorder %s40, 1
      %p210 = por %p208, %p209
      %p212 = scmp.ne.s32.totalorder %s197, %s211
      %p213 = scmp.eq.s32.totalorder %s40, 0
      %p214 = por %p212, %p213
      %s216 = sadd.s32 %s215, 1
      %p219 = scmp.eq.s32.totalorder %s34, 1
      %p220 = scmp.ne.s32.totalorder %s215, %s217
      %p221 = scmp.eq.s32.totalorder %s34, 0
      %p222 = por %p220, %p221
      %p223 = scmp.ne.s32.totalorder %s215, %s217
      %p224 = scmp.eq.s32.totalorder %s39, 1
      %p225 = por %p223, %p224
      %p226 = scmp.ne.s32.totalorder %s217, %s218
      %p227 = scmp.eq.s32.totalorder %s39, 0
      %p228 = por %p226, %p227
      %p229 = scmp.ne.s32.totalorder %s217, %s218
      %p230 = scmp.eq.s32.totalorder %s40, 1
      %p231 = por %p229, %p230
      %p233 = scmp.ne.s32.totalorder %s218, %s232
      %p234 = scmp.eq.s32.totalorder %s40, 0
      %p235 = por %p233, %p234
      %s237 = sadd.s32 %s236, 1
      %p240 = scmp.eq.s32.totalorder %s34, 1
      %p241 = scmp.ne.s32.totalorder %s236, %s238
      %p242 = scmp.eq.s32.totalorder %s34, 0
      %p243 = por %p241, %p242
      %p244 = scmp.ne.s32.totalorder %s236, %s238
      %p245 = scmp.eq.s32.totalorder %s39, 1
      %p246 = por %p244, %p245
      %p247 = scmp.ne.s32.totalorder %s238, %s239
      %p248 = scmp.eq.s32.totalorder %s39, 0
      %p249 = por %p247, %p248
      %p250 = scmp.ne.s32.totalorder %s238, %s239
      %p251 = scmp.eq.s32.totalorder %s40, 1
      %p252 = por %p250, %p251
      %p254 = scmp.ne.s32.totalorder %s239, %s253
      %p255 = scmp.eq.s32.totalorder %s40, 0
      %p256 = por %p254, %p255
      %s258 = sadd.s32 %s257, 1
      %p261 = scmp.eq.s32.totalorder %s34, 1
      %p262 = scmp.ne.s32.totalorder %s257, %s259
      %p263 = scmp.eq.s32.totalorder %s34, 0
      %p264 = por %p262, %p263
      %p265 = scmp.ne.s32.totalorder %s257, %s259
      %p266 = scmp.eq.s32.totalorder %s39, 1
      %p267 = por %p265, %p266
      %p268 = scmp.ne.s32.totalorder %s259, %s260
      %p269 = scmp.eq.s32.totalorder %s39, 0
      %p270 = por %p268, %p269
      %p271 = scmp.ne.s32.totalorder %s259, %s260
      %p272 = scmp.eq.s32.totalorder %s40, 1
      %p273 = por %p271, %p272
      %p275 = scmp.ne.s32.totalorder %s260, %s274
      %p276 = scmp.eq.s32.totalorder %s40, 0
      %p277 = por %p275, %p276
      %s279 = sadd.s32 %s278, 1
      %p282 = scmp.eq.s32.totalorder %s34, 1
      %p283 = scmp.ne.s32.totalorder %s278, %s280
      %p284 = scmp.eq.s32.totalorder %s34, 0
      %p285 = por %p283, %p284
      %p286 = scmp.ne.s32.totalorder %s278, %s280
      %p287 = scmp.eq.s32.totalorder %s39, 1
      %p288 = por %p286, %p287
      %p289 = scmp.ne.s32.totalorder %s280, %s281
      %p290 = scmp.eq.s32.totalorder %s39, 0
      %p291 = por %p289, %p290
      %p292 = scmp.ne.s32.totalorder %s280, %s281
      %p293 = scmp.eq.s32.totalorder %s40, 1
      %p294 = por %p292, %p293
      %p296 = scmp.ne.s32.totalorder %s281, %s295
      %p297 = scmp.eq.s32.totalorder %s40, 0
      %p298 = por %p296, %p297
      %s300 = sadd.s32 %s299, 1
      %p303 = scmp.eq.s32.totalorder %s34, 1
      %p304 = scmp.ne.s32.totalorder %s299, %s301
      %p305 = scmp.eq.s32.totalorder %s34, 0
      %p306 = por %p304, %p305
      %p307 = scmp.ne.s32.totalorder %s299, %s301
      %p308 = scmp.eq.s32.totalorder %s39, 1
      %p309 = por %p307, %p308
      %p310 = scmp.ne.s32.totalorder %s301, %s302
      %p311 = scmp.eq.s32.totalorder %s39, 0
      %p312 = por %p310, %p311
      %p313 = scmp.ne.s32.totalorder %s301, %s302
      %p314 = scmp.eq.s32.totalorder %s40, 1
      %p315 = por %p313, %p314
      %p317 = scmp.ne.s32.totalorder %s302, %s316
      %p318 = scmp.eq.s32.totalorder %s40, 0
      %p319 = por %p317, %p318
      %s321 = sadd.s32 %s320, 1
      %p324 = scmp.eq.s32.totalorder %s34, 1
      %p325 = scmp.ne.s32.totalorder %s320, %s322
      %p326 = scmp.eq.s32.totalorder %s34, 0
      %p327 = por %p325, %p326
      %p328 = scmp.ne.s32.totalorder %s320, %s322
      %p329 = scmp.eq.s32.totalorder %s39, 1
      %p330 = por %p328, %p329
      %p331 = scmp.ne.s32.totalorder %s322, %s323
      %p332 = scmp.eq.s32.totalorder %s39, 0
      %p333 = por %p331, %p332
      %p334 = scmp.ne.s32.totalorder %s322, %s323
      %p335 = scmp.eq.s32.totalorder %s40, 1
      %p336 = por %p334, %p335
      %p338 = scmp.ne.s32.totalorder %s323, %s337
      %p339 = scmp.eq.s32.totalorder %s40, 0
      %p340 = por %p338, %p339
      %s342 = sadd.s32 %s341, 1
      %p345 = scmp.eq.s32.totalorder %s34, 1
      %p346 = scmp.ne.s32.totalorder %s341, %s343
      %p347 = scmp.eq.s32.totalorder %s34, 0
      %p348 = por %p346, %p347
      %p349 = scmp.ne.s32.totalorder %s341, %s343
      %p350 = scmp.eq.s32.totalorder %s39, 1
      %p351 = por %p349, %p350
      %p352 = scmp.ne.s32.totalorder %s343, %s344
      %p353 = scmp.eq.s32.totalorder %s39, 0
      %p354 = por %p352, %p353
      %p355 = scmp.ne.s32.totalorder %s343, %s344
      %p356 = scmp.eq.s32.totalorder %s40, 1
      %p357 = por %p355, %p356
      %p359 = scmp.ne.s32.totalorder %s344, %s358
      %p360 = scmp.eq.s32.totalorder %s40, 0
      %p361 = por %p359, %p360
      %s363 = sadd.s32 %s362, 1
      %p366 = scmp.eq.s32.totalorder %s34, 1
      %p367 = scmp.ne.s32.totalorder %s362, %s364
      %p368 = scmp.eq.s32.totalorder %s34, 0
      %p369 = por %p367, %p368
      %p370 = scmp.ne.s32.totalorder %s362, %s364
      %p371 = scmp.eq.s32.totalorder %s39, 1
      %p372 = por %p370, %p371
      %p373 = scmp.ne.s32.totalorder %s364, %s365
      %p374 = scmp.eq.s32.totalorder %s39, 0
      %p375 = por %p373, %p374
      %p376 = scmp.ne.s32.totalorder %s364, %s365
      %p377 = scmp.eq.s32.totalorder %s40, 1
      %p378 = por %p376, %p377
      %p380 = scmp.ne.s32.totalorder %s365, %s379
      %p381 = scmp.eq.s32.totalorder %s40, 0
      %p382 = por %p380, %p381
      %s384 = sadd.s32 %s383, 1
      %p387 = scmp.eq.s32.totalorder %s34, 1
      %p388 = scmp.ne.s32.totalorder %s383, %s385
      %p389 = scmp.eq.s32.totalorder %s34, 0
      %p390 = por %p388, %p389
      %p391 = scmp.ne.s32.totalorder %s383, %s385
      %p392 = scmp.eq.s32.totalorder %s39, 1
      %p393 = por %p391, %p392
      %p394 = scmp.ne.s32.totalorder %s385, %s386
      %p395 = scmp.eq.s32.totalorder %s39, 0
      %p396 = por %p394, %p395
      %p397 = scmp.ne.s32.totalorder %s385, %s386
      %p398 = scmp.eq.s32.totalorder %s40, 1
      %p399 = por %p397, %p398
      %p401 = scmp.ne.s32.totalorder %s386, %s400
      %p402 = scmp.eq.s32.totalorder %s40, 0
      %p403 = por %p401, %p402
      %s405 = sadd.s32 %s404, 1
      %p408 = scmp.eq.s32.totalorder %s34, 1
      %p409 = scmp.ne.s32.totalorder %s404, %s406
      %p410 = scmp.eq.s32.totalorder %s34, 0
      %p411 = por %p409, %p410
      %p412 = scmp.ne.s32.totalorder %s404, %s406
      %p413 = scmp.eq.s32.totalorder %s39, 1
      %p414 = por %p412, %p413
      %p415 = scmp.ne.s32.totalorder %s406, %s407
      %p416 = scmp.eq.s32.totalorder %s39, 0
      %p417 = por %p415, %p416
      %p418 = scmp.ne.s32.totalorder %s406, %s407
      %p419 = scmp.eq.s32.totalorder %s40, 1
      %p420 = por %p418, %p419
      %p422 = scmp.ne.s32.totalorder %s407, %s421
      %p423 = scmp.eq.s32.totalorder %s40, 0
      %p424 = por %p422, %p423
      %s426 = sadd.s32 %s425, 1
      %p429 = scmp.eq.s32.totalorder %s34, 1
      %p430 = scmp.ne.s32.totalorder %s425, %s427
      %p431 = scmp.eq.s32.totalorder %s34, 0
      %p432 = por %p430, %p431
      %p433 = scmp.ne.s32.totalorder %s425, %s427
      %p434 = scmp.eq.s32.totalorder %s39, 1
      %p435 = por %p433, %p434
      %p436 = scmp.ne.s32.totalorder %s427, %s428
      %p437 = scmp.eq.s32.totalorder %s39, 0
      %p438 = por %p436, %p437
      %p439 = scmp.ne.s32.totalorder %s427, %s428
      %p440 = scmp.eq.s32.totalorder %s40, 1
      %p441 = por %p439, %p440
      %p443 = scmp.ne.s32.totalorder %s428, %s442
      %p444 = scmp.eq.s32.totalorder %s40, 0
      %p445 = por %p443, %p444
      %s446 = ssub.s32 %s34, %s41
      %p447 = scmp.eq.s32.totalorder %s446, 0
      %s449 = sadd.s32 %s448, 1
      %s450 = scalar_select %p447, %s448, %s449
      %p453 = pneg %p447
      %p454 = scmp.eq.s32.totalorder %s34, 1
      %p455 = por %p453, %p454
      %p456 = scmp.ne.s32.totalorder %s448, %s451
      %p457 = scmp.eq.s32.totalorder %s34, 0
      %p458 = por %p456, %p457
      %p459 = scmp.ne.s32.totalorder %s448, %s451
      %p460 = scmp.eq.s32.totalorder %s39, 1
      %p461 = por %p459, %p460
      %p462 = scmp.ne.s32.totalorder %s451, %s452
      %p463 = scmp.eq.s32.totalorder %s39, 0
      %p464 = por %p462, %p463
      %p465 = scmp.ne.s32.totalorder %s451, %s452
      %p466 = scmp.eq.s32.totalorder %s40, 1
      %p467 = por %p465, %p466
      %p469 = scmp.ne.s32.totalorder %s452, %s468
      %p470 = scmp.eq.s32.totalorder %s40, 0
      %p471 = por %p469, %p470
      %s472 = ssub.s32 %s34, %s41
      %p473 = scmp.eq.s32.totalorder %s472, 0
      %s475 = sadd.s32 %s474, 1
      %s476 = scalar_select %p473, %s474, %s475
      %p479 = pneg %p473
      %p480 = scmp.eq.s32.totalorder %s34, 1
      %p481 = por %p479, %p480
      %p482 = scmp.ne.s32.totalorder %s474, %s477
      %p483 = scmp.eq.s32.totalorder %s34, 0
      %p484 = por %p482, %p483
      %p485 = scmp.ne.s32.totalorder %s474, %s477
      %p486 = scmp.eq.s32.totalorder %s39, 1
      %p487 = por %p485, %p486
      %p488 = scmp.ne.s32.totalorder %s477, %s478
      %p489 = scmp.eq.s32.totalorder %s39, 0
      %p490 = por %p488, %p489
      %p491 = scmp.ne.s32.totalorder %s477, %s478
      %p492 = scmp.eq.s32.totalorder %s40, 1
      %p493 = por %p491, %p492
      %p495 = scmp.ne.s32.totalorder %s478, %s494
      %p496 = scmp.eq.s32.totalorder %s40, 0
      %p497 = por %p495, %p496
      %s498 = ssub.s32 %s34, %s41
      %p499 = scmp.eq.s32.totalorder %s498, 0
      %s501 = sadd.s32 %s500, 1
      %s502 = scalar_select %p499, %s500, %s501
      %p505 = pneg %p499
      %p506 = scmp.eq.s32.totalorder %s34, 1
      %p507 = por %p505, %p506
      %p508 = scmp.ne.s32.totalorder %s500, %s503
      %p509 = scmp.eq.s32.totalorder %s34, 0
      %p510 = por %p508, %p509
      %p511 = scmp.ne.s32.totalorder %s500, %s503
      %p512 = scmp.eq.s32.totalorder %s39, 1
      %p513 = por %p511, %p512
      %p514 = scmp.ne.s32.totalorder %s503, %s504
      %p515 = scmp.eq.s32.totalorder %s39, 0
      %p516 = por %p514, %p515
      %p517 = scmp.ne.s32.totalorder %s503, %s504
      %p518 = scmp.eq.s32.totalorder %s40, 1
      %p519 = por %p517, %p518
      %p521 = scmp.ne.s32.totalorder %s504, %s520
      %p522 = scmp.eq.s32.totalorder %s40, 0
      %p523 = por %p521, %p522
      %p524 = scmp.le.s32.totalorder 1, %s34
      %p525 = scmp.lt.s32.totalorder %s34, 3
      %p526 = pnand %p524, %p525
      %p527 = pneg %p526
      // Predicated region
      $region9: #{busnet_finetune_forward.1} parent=5 // pred_check
        _
      $region10: #{busnet_finetune_forward.1} parent=5 // pred_check_branch
        %529 = sbr.rel (%p526) target = $region12
      $region11: #{busnet_finetune_forward.1} parent=5 // pred_region
        %s530 = ssub.s32 %s34, 1
        // Predicated region
        $region13: #{busnet_finetune_forward.1} parent=11 // pred_check
          %p531 = pneg %p81
        $region14: #{busnet_finetune_forward.1} parent=11 // pred_check_branch
          %533 = sbr.rel (%p531) target = $region16
        $region15: #{busnet_finetune_forward.1} parent=11 // pred_region
          _
        $region16: #{busnet_finetune_forward.1} parent=11 // pred_fallthru
          _
        // Predicated region
        $region17: #{busnet_finetune_forward.1} parent=11 // pred_check
          %p534 = pneg %p102
        $region18: #{busnet_finetune_forward.1} parent=11 // pred_check_branch
          %536 = sbr.rel (%p534) target = $region20
        $region19: #{busnet_finetune_forward.1} parent=11 // pred_region
          _
        $region20: #{busnet_finetune_forward.1} parent=11 // pred_fallthru
          _
        // Predicated region
        $region21: #{busnet_finetune_forward.1} parent=11 // pred_check
          %p537 = pneg %p123
        $region22: #{busnet_finetune_forward.1} parent=11 // pred_check_branch
          %539 = sbr.rel (%p537) target = $region24
        $region23: #{busnet_finetune_forward.1} parent=11 // pred_region
          _
        $region24: #{busnet_finetune_forward.1} parent=11 // pred_fallthru
          _
        // Predicated region
        $region25: #{busnet_finetune_forward.1} parent=11 // pred_check
          %p540 = pneg %p144
        $region26: #{busnet_finetune_forward.1} parent=11 // pred_check_branch
          %542 = sbr.rel (%p540) target = $region28
        $region27: #{busnet_finetune_forward.1} parent=11 // pred_region
          _
        $region28: #{busnet_finetune_forward.1} parent=11 // pred_fallthru
          _
        // Predicated region
        $region29: #{busnet_finetune_forward.1} parent=11 // pred_check
          %p543 = pneg %p165
        $region30: #{busnet_finetune_forward.1} parent=11 // pred_check_branch
          %545 = sbr.rel (%p543) target = $region32
        $region31: #{busnet_finetune_forward.1} parent=11 // pred_region
          _
        $region32: #{busnet_finetune_forward.1} parent=11 // pred_fallthru
          _
        // Predicated region
        $region33: #{busnet_finetune_forward.1} parent=11 // pred_check
          %p546 = pneg %p186
        $region34: #{busnet_finetune_forward.1} parent=11 // pred_check_branch
          %548 = sbr.rel (%p546) target = $region36
        $region35: #{busnet_finetune_forward.1} parent=11 // pred_region
          _
        $region36: #{busnet_finetune_forward.1} parent=11 // pred_fallthru
          _
        // Predicated region
        $region37: #{busnet_finetune_forward.1} parent=11 // pred_check
          %p549 = pneg %p207
        $region38: #{busnet_finetune_forward.1} parent=11 // pred_check_branch
          %551 = sbr.rel (%p549) target = $region40
        $region39: #{busnet_finetune_forward.1} parent=11 // pred_region
          _
        $region40: #{busnet_finetune_forward.1} parent=11 // pred_fallthru
          _
        // Predicated region
        $region41: #{busnet_finetune_forward.1} parent=11 // pred_check
          %p552 = pneg %p228
        $region42: #{busnet_finetune_forward.1} parent=11 // pred_check_branch
          %554 = sbr.rel (%p552) target = $region44
        $region43: #{busnet_finetune_forward.1} parent=11 // pred_region
          _
        $region44: #{busnet_finetune_forward.1} parent=11 // pred_fallthru
          _
        // Predicated region
        $region45: #{busnet_finetune_forward.1} parent=11 // pred_check
          %p555 = pneg %p249
        $region46: #{busnet_finetune_forward.1} parent=11 // pred_check_branch
          %557 = sbr.rel (%p555) target = $region48
        $region47: #{busnet_finetune_forward.1} parent=11 // pred_region
          _
        $region48: #{busnet_finetune_forward.1} parent=11 // pred_fallthru
          _
        // Predicated region
        $region49: #{busnet_finetune_forward.1} parent=11 // pred_check
          %p558 = pneg %p270
        $region50: #{busnet_finetune_forward.1} parent=11 // pred_check_branch
          %560 = sbr.rel (%p558) target = $region52
        $region51: #{busnet_finetune_forward.1} parent=11 // pred_region
          _
        $region52: #{busnet_finetune_forward.1} parent=11 // pred_fallthru
          _
        // Predicated region
        $region53: #{busnet_finetune_forward.1} parent=11 // pred_check
          %p561 = pneg %p291
        $region54: #{busnet_finetune_forward.1} parent=11 // pred_check_branch
          %563 = sbr.rel (%p561) target = $region56
        $region55: #{busnet_finetune_forward.1} parent=11 // pred_region
          _
        $region56: #{busnet_finetune_forward.1} parent=11 // pred_fallthru
          _
        // Predicated region
        $region57: #{busnet_finetune_forward.1} parent=11 // pred_check
          %p564 = pneg %p312
        $region58: #{busnet_finetune_forward.1} parent=11 // pred_check_branch
          %566 = sbr.rel (%p564) target = $region60
        $region59: #{busnet_finetune_forward.1} parent=11 // pred_region
          _
        $region60: #{busnet_finetune_forward.1} parent=11 // pred_fallthru
          _
        // Predicated region
        $region61: #{busnet_finetune_forward.1} parent=11 // pred_check
          %p567 = pneg %p333
        $region62: #{busnet_finetune_forward.1} parent=11 // pred_check_branch
          %569 = sbr.rel (%p567) target = $region64
        $region63: #{busnet_finetune_forward.1} parent=11 // pred_region
          _
        $region64: #{busnet_finetune_forward.1} parent=11 // pred_fallthru
          _
        // Predicated region
        $region65: #{busnet_finetune_forward.1} parent=11 // pred_check
          %p570 = pneg %p354
        $region66: #{busnet_finetune_forward.1} parent=11 // pred_check_branch
          %572 = sbr.rel (%p570) target = $region68
        $region67: #{busnet_finetune_forward.1} parent=11 // pred_region
          _
        $region68: #{busnet_finetune_forward.1} parent=11 // pred_fallthru
          _
        // Predicated region
        $region69: #{busnet_finetune_forward.1} parent=11 // pred_check
          %p573 = pneg %p375
        $region70: #{busnet_finetune_forward.1} parent=11 // pred_check_branch
          %575 = sbr.rel (%p573) target = $region72
        $region71: #{busnet_finetune_forward.1} parent=11 // pred_region
          _
        $region72: #{busnet_finetune_forward.1} parent=11 // pred_fallthru
          _
        // Predicated region
        $region73: #{busnet_finetune_forward.1} parent=11 // pred_check
          %p576 = pneg %p396
        $region74: #{busnet_finetune_forward.1} parent=11 // pred_check_branch
          %578 = sbr.rel (%p576) target = $region76
        $region75: #{busnet_finetune_forward.1} parent=11 // pred_region
          _
        $region76: #{busnet_finetune_forward.1} parent=11 // pred_fallthru
          _
        // Predicated region
        $region77: #{busnet_finetune_forward.1} parent=11 // pred_check
          %p579 = pneg %p417
        $region78: #{busnet_finetune_forward.1} parent=11 // pred_check_branch
          %581 = sbr.rel (%p579) target = $region80
        $region79: #{busnet_finetune_forward.1} parent=11 // pred_region
          _
        $region80: #{busnet_finetune_forward.1} parent=11 // pred_fallthru
          _
        // Predicated region
        $region81: #{busnet_finetune_forward.1} parent=11 // pred_check
          %p582 = pneg %p438
        $region82: #{busnet_finetune_forward.1} parent=11 // pred_check_branch
          %584 = sbr.rel (%p582) target = $region84
        $region83: #{busnet_finetune_forward.1} parent=11 // pred_region
          _
        $region84: #{busnet_finetune_forward.1} parent=11 // pred_fallthru
          _
      $region12: #{busnet_finetune_forward.1} parent=5 // pred_fallthru
        _
      %p585 = scmp.lt.s32.totalorder %s34, 2
      // Predicated region
      $region85: #{busnet_finetune_forward.1} parent=5 // pred_check
        %p586 = pneg %p585
      $region86: #{busnet_finetune_forward.1} parent=5 // pred_check_branch
        %588 = sbr.rel (%p586) target = $region88
      $region87: #{busnet_finetune_forward.1} parent=5 // pred_region
        // Predicated region
        $region89: #{busnet_finetune_forward.1} parent=87 // pred_check
          %p589 = pneg %p54
        $region90: #{busnet_finetune_forward.1} parent=87 // pred_check_branch
          %591 = sbr.rel (%p589) target = $region92
        $region91: #{busnet_finetune_forward.1} parent=87 // pred_region
          %p592 = scmp.lt.s32.totalorder %s34, 1
          %s593 = scalar_select %p592, %s34, 1
          %s594 = smul.addr %s593, 32
          %s595 = smul.addr %s594, 4
          %s596 = scalar_lea.vmem %s0, %s595
        $region92: #{busnet_finetune_forward.1} parent=87 // pred_fallthru
          _
      $region88: #{busnet_finetune_forward.1} parent=5 // pred_fallthru
        _
      %p597 = scmp.le.s32.totalorder 1, %s34
      %p598 = scmp.lt.s32.totalorder %s34, 3
      %p599 = pnand %p597, %p598
      %p600 = pneg %p599
      // Predicated region
      $region93: #{busnet_finetune_forward.1} parent=5 // pred_check
        _
      $region94: #{busnet_finetune_forward.1} parent=5 // pred_check_branch
        %602 = sbr.rel (%p599) target = $region96
      $region95: #{busnet_finetune_forward.1} parent=5 // pred_region
        %s603 = ssub.s32 %s34, 1
        %p604 = scmp.lt.s32.totalorder %s39, 1
        %s605 = scalar_select %p604, %s39, 1
        %s606 = smul.addr %s605, 32
        %s607 = smul.addr %s606, 4
        %s608 = scalar_lea.vmem %s0, %s607
        %p609 = pneg %p60
        %p610 = pneg %p57
        %p611 = pneg %p81
        %p612 = pneg %p78
        %p613 = pneg %p102
        %p614 = pneg %p99
        %p615 = pneg %p123
        %p616 = pneg %p120
        %p617 = pneg %p144
        %p618 = pneg %p141
        %p619 = pneg %p165
        %p620 = pneg %p162
        %p621 = pneg %p186
        %p622 = pneg %p183
        %p623 = pneg %p207
        %p624 = pneg %p204
        %p625 = pneg %p228
        %p626 = pneg %p225
        %p627 = pneg %p249
        %p628 = pneg %p246
        %p629 = pneg %p270
        %p630 = pneg %p267
        %p631 = pneg %p291
        %p632 = pneg %p288
        %p633 = pneg %p312
        %p634 = pneg %p309
        %p635 = pneg %p333
        %p636 = pneg %p330
        %p637 = pneg %p354
        %p638 = pneg %p351
        %p639 = pneg %p375
        %p640 = pneg %p372
        %p641 = pneg %p396
        %p642 = pneg %p393
        %p643 = pneg %p417
        %p644 = pneg %p414
        %p645 = pneg %p438
        %p646 = pneg %p435
        %p647 = pneg %p464
        %p648 = pneg %p461
        %s649 = sand.u32 %s451, 1
        %s650 = scalar_lea.sflag [#allocation3], %s649
        %s651 = sand.u32 %s451, 1
        %s652 = smul.addr %s651, 16
        %s653 = scalar_lea.vmem [#allocation2], %s652
        %p654 = pneg %p490
        %p655 = pneg %p487
        %s656 = sand.u32 %s477, 1
        %s657 = scalar_lea.sflag [#allocation5], %s656
        %s658 = sand.u32 %s477, 1
        %s659 = smul.addr %s658, 16
        %s660 = scalar_lea.vmem [#allocation4], %s659
        %p661 = pneg %p516
        %p662 = pneg %p513
        %p663 = scmp.lt.s32.totalorder %s39, 1
        %s664 = scalar_select %p663, %s39, 1
        %s665 = smul.addr %s664, 2
        %s666 = smul.addr %s665, 8
        %s667 = scalar_lea.vmem %s21, %s666
        %p668 = scmp.lt.s32.totalorder %s39, 1
        %s669 = scalar_select %p668, %s39, 1
        %s670 = smul.addr %s669, 32
        %s671 = smul.addr %s670, 4
        %s672 = scalar_lea.vmem %s0, %s671
        %p673 = scmp.lt.s32.totalorder %s39, 1
        %s674 = scalar_select %p673, %s39, 1
        %s675 = smul.addr %s674, 2
        %s676 = smul.addr %s675, 8
        %s677 = scalar_lea.vmem %s21, %s676
        %v678 = vld [vmem:[%s672] sm:$0xf]
        %v679 = vld [vmem:[%s672 + $0x4] sm:$0xf]
        %v680 = vld [vmem:[%s672 + $0x8] sm:$0xf]
        %v681 = vld [vmem:[%s672 + $0xc] sm:$0xf]
        %v682 = vld [vmem:[%s672 + $0x10] sm:$0xf]
        %v683 = vld [vmem:[%s672 + $0x14] sm:$0xf]
        %v684 = vld [vmem:[%s672 + $0x18] sm:$0xf]
        %v685 = vld [vmem:[%s672 + $0x1c] sm:$0xf]
        %v686 = vld [vmem:[%s672 + $0x20] sm:$0xf]
        %v687 = vld [vmem:[%s672 + $0x24] sm:$0xf]
        %v688 = vld [vmem:[%s672 + $0x28] sm:$0xf]
        %v689 = vld [vmem:[%s672 + $0x2c] sm:$0xf]
        %v690 = vld [vmem:[%s672 + $0x30] sm:$0xf]
        %v691 = vld [vmem:[%s672 + $0x34] sm:$0xf]
        %v692 = vld [vmem:[%s672 + $0x38] sm:$0xf]
        %v693 = vld [vmem:[%s672 + $0x3c] sm:$0xf]
        %v694 = vld [vmem:[%s672 + $0x40] sm:$0xf]
        %v695 = vld [vmem:[%s672 + $0x44] sm:$0xf]
        %v696 = vld [vmem:[%s672 + $0x48] sm:$0xf]
        %v697 = vld [vmem:[%s672 + $0x4c] sm:$0xf]
        %v698 = vld [vmem:[%s672 + $0x50] sm:$0xf]
        %v699 = vld [vmem:[%s672 + $0x54] sm:$0xf]
        %v700 = vld [vmem:[%s672 + $0x58] sm:$0xf]
        %v701 = vld [vmem:[%s672 + $0x5c] sm:$0xf]
        %v702 = vld [vmem:[%s672 + $0x60] sm:$0xf]
        %v703 = vld [vmem:[%s672 + $0x64] sm:$0xf]
        %v704 = vld [vmem:[%s672 + $0x68] sm:$0xf]
        %v705 = vld [vmem:[%s672 + $0x6c] sm:$0xf]
        %v706 = vld [vmem:[%s672 + $0x70] sm:$0xf]
        %v707 = vld [vmem:[%s672 + $0x74] sm:$0xf]
        %v708 = vld [vmem:[%s672 + $0x78] sm:$0xf]
        %v709 = vld [vmem:[%s672 + $0x7c] sm:$0xf]
        %v710 = vld [vmem:[%s1] sm:$0xf]
        %v711 = vld [vmem:[%s1 + $0x4] sm:$0xf]
        %v712 = vld [vmem:[%s1 + $0x8] sm:$0xf]
        %v713 = vld [vmem:[%s1 + $0xc] sm:$0xf]
        %v714 = vld [vmem:[%s1 + $0x10] sm:$0xf]
        %v715 = vld [vmem:[%s1 + $0x14] sm:$0xf]
        %v716 = vld [vmem:[%s1 + $0x18] sm:$0xf]
        %v717 = vld [vmem:[%s1 + $0x1c] sm:$0xf]
        %v718 = vld [vmem:[%s1 + $0x20] sm:$0xf]
        %v719 = vld [vmem:[%s1 + $0x24] sm:$0xf]
        %v720 = vld [vmem:[%s1 + $0x28] sm:$0xf]
        %v721 = vld [vmem:[%s1 + $0x2c] sm:$0xf]
        %v722 = vld [vmem:[%s1 + $0x30] sm:$0xf]
        %v723 = vld [vmem:[%s1 + $0x34] sm:$0xf]
        %v724 = vld [vmem:[%s1 + $0x38] sm:$0xf]
        %v725 = vld [vmem:[%s1 + $0x3c] sm:$0xf]
        %v726 = vld [vmem:[%s2] sm:$0x1]
        %v728 = vperm.slane %v726, 0
        %v762 = vunpack.c.l.b16 %v678
        %v763 = vunpack.c.l.b16 %v679
        %v764 = vunpack.c.l.b16 %v680
        %v765 = vunpack.c.l.b16 %v681
        %v766 = vunpack.c.l.b16 %v682
        %v767 = vunpack.c.l.b16 %v683
        %v768 = vunpack.c.l.b16 %v684
        %v769 = vunpack.c.l.b16 %v685
        %v770 = vunpack.c.l.b16 %v686
        %v771 = vunpack.c.l.b16 %v687
        %v772 = vunpack.c.l.b16 %v688
        %v773 = vunpack.c.l.b16 %v689
        %v774 = vunpack.c.l.b16 %v690
        %v775 = vunpack.c.l.b16 %v691
        %v776 = vunpack.c.l.b16 %v692
        %v777 = vunpack.c.l.b16 %v693
        %v778 = vunpack.c.l.b16 %v694
        %v779 = vunpack.c.l.b16 %v695
        %v780 = vunpack.c.l.b16 %v696
        %v781 = vunpack.c.l.b16 %v697
        %v782 = vunpack.c.l.b16 %v698
        %v783 = vunpack.c.l.b16 %v699
        %v784 = vunpack.c.l.b16 %v700
        %v785 = vunpack.c.l.b16 %v701
        %v786 = vunpack.c.l.b16 %v702
        %v787 = vunpack.c.l.b16 %v703
        %v788 = vunpack.c.l.b16 %v704
        %v789 = vunpack.c.l.b16 %v705
        %v790 = vunpack.c.l.b16 %v706
        %v791 = vunpack.c.l.b16 %v707
        %v792 = vunpack.c.l.b16 %v708
        %v793 = vunpack.c.l.b16 %v709
        %v794 = vpack.c.b16 %v763, %v762
        %v795 = vpack.c.b16 %v765, %v764
        %v796 = vpack.c.b16 %v767, %v766
        %v797 = vpack.c.b16 %v769, %v768
        %v798 = vpack.c.b16 %v771, %v770
        %v799 = vpack.c.b16 %v773, %v772
        %v800 = vpack.c.b16 %v775, %v774
        %v801 = vpack.c.b16 %v777, %v776
        %v802 = vpack.c.b16 %v779, %v778
        %v803 = vpack.c.b16 %v781, %v780
        %v804 = vpack.c.b16 %v783, %v782
        %v805 = vpack.c.b16 %v785, %v784
        %v806 = vpack.c.b16 %v787, %v786
        %v807 = vpack.c.b16 %v789, %v788
        %v808 = vpack.c.b16 %v791, %v790
        %v809 = vpack.c.b16 %v793, %v792
        %v842 = vunpack.c.l.b16 %v710
        %v843 = vunpack.c.l.b16 %v711
        %v844 = vunpack.c.l.b16 %v712
        %v845 = vunpack.c.l.b16 %v713
        %v846 = vunpack.c.l.b16 %v714
        %v847 = vunpack.c.l.b16 %v715
        %v848 = vunpack.c.l.b16 %v716
        %v849 = vunpack.c.l.b16 %v717
        %v850 = vunpack.c.l.b16 %v718
        %v851 = vunpack.c.l.b16 %v719
        %v852 = vunpack.c.l.b16 %v720
        %v853 = vunpack.c.l.b16 %v721
        %v854 = vunpack.c.l.b16 %v722
        %v855 = vunpack.c.l.b16 %v723
        %v856 = vunpack.c.l.b16 %v724
        %v857 = vunpack.c.l.b16 %v725
        %v858 = vpack.c.b16 %v843, %v842
        %v859 = vpack.c.b16 %v845, %v844
        %v860 = vpack.c.b16 %v847, %v846
        %v861 = vpack.c.b16 %v849, %v848
        %v862 = vpack.c.b16 %v851, %v850
        %v863 = vpack.c.b16 %v853, %v852
        %v864 = vpack.c.b16 %v855, %v854
        %v865 = vpack.c.b16 %v857, %v856
        %874 = vmatpush.bf16.msra.mxu0 %v865
        %875 = vmatpush.bf16.msra.mxu0 %v864
        %876 = vmatpush.bf16.msra.mxu0 %v863
        %877 = vmatpush.bf16.msra.mxu0 %v862
        %878 = vmatpush.bf16.msra.mxu0 %v861
        %879 = vmatpush.bf16.msra.mxu0 %v860
        %880 = vmatpush.bf16.msra.mxu0 %v859
        %881 = vmatpush.bf16.msra.mxu0 %v858
        %882 = vmatmul.bf16.gmra.mxu0 %v794
        %v883 = vpop.f32.mrf.mxu0
        %v884 = vadd.f32 %v728, %v883
        %v885 = vpop.f32.mrf.mxu0
        %v886 = vadd.f32 %v728, %v885
        %887 = vmatmul.bf16.gmra.mxu0 %v795
        %v888 = vpop.f32.mrf.mxu0
        %v889 = vadd.f32 %v728, %v888
        %v890 = vpop.f32.mrf.mxu0
        %v891 = vadd.f32 %v728, %v890
        %892 = vmatmul.bf16.gmra.mxu0 %v796
        %v893 = vpop.f32.mrf.mxu0
        %v894 = vadd.f32 %v728, %v893
        %v895 = vpop.f32.mrf.mxu0
        %v896 = vadd.f32 %v728, %v895
        %897 = vmatmul.bf16.gmra.mxu0 %v797
        %v898 = vpop.f32.mrf.mxu0
        %v899 = vadd.f32 %v728, %v898
        %v900 = vpop.f32.mrf.mxu0
        %v901 = vadd.f32 %v728, %v900
        %902 = vmatmul.bf16.gmra.mxu0 %v798
        %v903 = vpop.f32.mrf.mxu0
        %v904 = vadd.f32 %v728, %v903
        %v905 = vpop.f32.mrf.mxu0
        %v906 = vadd.f32 %v728, %v905
        %907 = vmatmul.bf16.gmra.mxu0 %v799
        %v908 = vpop.f32.mrf.mxu0
        %v909 = vadd.f32 %v728, %v908
        %v910 = vpop.f32.mrf.mxu0
        %v911 = vadd.f32 %v728, %v910
        %912 = vmatmul.bf16.gmra.mxu0 %v800
        %v913 = vpop.f32.mrf.mxu0
        %v914 = vadd.f32 %v728, %v913
        %v915 = vpop.f32.mrf.mxu0
        %v916 = vadd.f32 %v728, %v915
        %917 = vmatmul.bf16.gmra.mxu0 %v801
        %v918 = vpop.f32.mrf.mxu0
        %v919 = vadd.f32 %v728, %v918
        %v920 = vpop.f32.mrf.mxu0
        %v921 = vadd.f32 %v728, %v920
        %922 = vmatmul.bf16.gmra.mxu0 %v802
        %v923 = vpop.f32.mrf.mxu0
        %v924 = vadd.f32 %v728, %v923
        %v925 = vpop.f32.mrf.mxu0
        %v926 = vadd.f32 %v728, %v925
        %927 = vmatmul.bf16.gmra.mxu0 %v803
        %v928 = vpop.f32.mrf.mxu0
        %v929 = vadd.f32 %v728, %v928
        %v930 = vpop.f32.mrf.mxu0
        %v931 = vadd.f32 %v728, %v930
        %932 = vmatmul.bf16.gmra.mxu0 %v804
        %v933 = vpop.f32.mrf.mxu0
        %v934 = vadd.f32 %v728, %v933
        %v935 = vpop.f32.mrf.mxu0
        %v936 = vadd.f32 %v728, %v935
        %937 = vmatmul.bf16.gmra.mxu0 %v805
        %v938 = vpop.f32.mrf.mxu0
        %v939 = vadd.f32 %v728, %v938
        %v940 = vpop.f32.mrf.mxu0
        %v941 = vadd.f32 %v728, %v940
        %942 = vmatmul.bf16.gmra.mxu0 %v806
        %v943 = vpop.f32.mrf.mxu0
        %v944 = vadd.f32 %v728, %v943
        %v945 = vpop.f32.mrf.mxu0
        %v946 = vadd.f32 %v728, %v945
        %947 = vmatmul.bf16.gmra.mxu0 %v807
        %v948 = vpop.f32.mrf.mxu0
        %v949 = vadd.f32 %v728, %v948
        %v950 = vpop.f32.mrf.mxu0
        %v951 = vadd.f32 %v728, %v950
        %952 = vmatmul.bf16.gmra.mxu0 %v808
        %v953 = vpop.f32.mrf.mxu0
        %v954 = vadd.f32 %v728, %v953
        %v955 = vpop.f32.mrf.mxu0
        %v956 = vadd.f32 %v728, %v955
        %957 = vmatmul.bf16.gmra.mxu0 %v809
        %v958 = vpop.f32.mrf.mxu0
        %v959 = vadd.f32 %v728, %v958
        %v960 = vpop.f32.mrf.mxu0
        %v961 = vadd.f32 %v728, %v960
        %962 = vdwg.mxu0
        %v963 = vmax.f32 %v884, 0.0
        %v964 = vmax.f32 %v886, 0.0
        %v965 = vmax.f32 %v889, 0.0
        %v966 = vmax.f32 %v891, 0.0
        %v967 = vmax.f32 %v894, 0.0
        %v968 = vmax.f32 %v896, 0.0
        %v969 = vmax.f32 %v899, 0.0
        %v970 = vmax.f32 %v901, 0.0
        %v971 = vmax.f32 %v904, 0.0
        %v972 = vmax.f32 %v906, 0.0
        %v973 = vmax.f32 %v909, 0.0
        %v974 = vmax.f32 %v911, 0.0
        %v975 = vmax.f32 %v914, 0.0
        %v976 = vmax.f32 %v916, 0.0
        %v977 = vmax.f32 %v919, 0.0
        %v978 = vmax.f32 %v921, 0.0
        %v979 = vmax.f32 %v924, 0.0
        %v980 = vmax.f32 %v926, 0.0
        %v981 = vmax.f32 %v929, 0.0
        %v982 = vmax.f32 %v931, 0.0
        %v983 = vmax.f32 %v934, 0.0
        %v984 = vmax.f32 %v936, 0.0
        %v985 = vmax.f32 %v939, 0.0
        %v986 = vmax.f32 %v941, 0.0
        %v987 = vmax.f32 %v944, 0.0
        %v988 = vmax.f32 %v946, 0.0
        %v989 = vmax.f32 %v949, 0.0
        %v990 = vmax.f32 %v951, 0.0
        %v991 = vmax.f32 %v954, 0.0
        %v992 = vmax.f32 %v956, 0.0
        %v993 = vmax.f32 %v959, 0.0
        %v994 = vmax.f32 %v961, 0.0
        %v995 = vld [vmem:[%s3] sm:$0xf]
        %v996 = vld [vmem:[%s3 + $0x4] sm:$0xf]
        %v997 = vpack.c.bf16 %v964, %v963
        %v998 = vpack.c.bf16 %v966, %v965
        %v999 = vpack.c.bf16 %v968, %v967
        %v1000 = vpack.c.bf16 %v970, %v969
        %v1001 = vpack.c.bf16 %v972, %v971
        %v1002 = vpack.c.bf16 %v974, %v973
        %v1003 = vpack.c.bf16 %v976, %v975
        %v1004 = vpack.c.bf16 %v978, %v977
        %v1005 = vpack.c.bf16 %v980, %v979
        %v1006 = vpack.c.bf16 %v982, %v981
        %v1007 = vpack.c.bf16 %v984, %v983
        %v1008 = vpack.c.bf16 %v986, %v985
        %v1009 = vpack.c.bf16 %v988, %v987
        %v1010 = vpack.c.bf16 %v990, %v989
        %v1011 = vpack.c.bf16 %v992, %v991
        %v1012 = vpack.c.bf16 %v994, %v993
        %v1015 = vunpack.c.l.b16 %v995
        %v1016 = vunpack.c.l.b16 %v996
        %v1017 = vpack.c.b16 %v1016, %v1015
        %1019 = vmatpush.bf16.xpose.msra.mxu0 %v1004
        %1020 = vmatpush.bf16.xpose.msra.mxu0 %v1003
        %1021 = vmatpush.bf16.xpose.msra.mxu0 %v1002
        %1022 = vmatpush.bf16.xpose.msra.mxu0 %v1001
        %1023 = vmatpush.bf16.xpose.msra.mxu0 %v1000
        %1024 = vmatpush.bf16.xpose.msra.mxu0 %v999
        %1025 = vmatpush.bf16.xpose.msra.mxu0 %v998
        %1026 = vmatpush.bf16.xpose.msra.mxu0 %v997
        %1027 = vmatmul.bf16.gmra.mxu0 %v1017
        %v1028 = vpop.f32.mrf.mxu0
        %v1029 = vadd.f32 0.0, %v1028
        %v1030 = vpop.f32.mrf.mxu0
        %v1031 = vadd.f32 0.0, %v1030
        %1032 = vdwg.mxu0
        %1033 = vmatpush.bf16.xpose.msra.mxu0 %v1012
        %1034 = vmatpush.bf16.xpose.msra.mxu0 %v1011
        %1035 = vmatpush.bf16.xpose.msra.mxu0 %v1010
        %1036 = vmatpush.bf16.xpose.msra.mxu0 %v1009
        %1037 = vmatpush.bf16.xpose.msra.mxu0 %v1008
        %1038 = vmatpush.bf16.xpose.msra.mxu0 %v1007
        %1039 = vmatpush.bf16.xpose.msra.mxu0 %v1006
        %1040 = vmatpush.bf16.xpose.msra.mxu0 %v1005
        %1041 = vmatmul.bf16.gmra.mxu0 %v1017
        %v1042 = vpop.f32.mrf.mxu0
        %v1043 = vadd.f32 0.0, %v1042
        %v1044 = vpop.f32.mrf.mxu0
        %v1045 = vadd.f32 0.0, %v1044
        %1046 = vdwg.mxu0
        %v1047 = vmul.f32 %v1029, 0.17677669
        %v1048 = vmul.f32 %v1043, 0.17677669
        %v1049 = vmul.f32 %v1031, 0.17677669
        %v1050 = vmul.f32 %v1045, 0.17677669
        %v1051 = vmax.f32 %v1047, %v1048
        %1052 = vmax.xlane.f32.xlu0 %v1051
        %v1053 = vpop.xlane.xlu0 %1052
        %v1054 = vmax.f32 %v1049, %v1050
        %1055 = vmax.xlane.f32.xlu0 %v1054
        %v1056 = vpop.xlane.xlu0 %1055
        %v1057 = vsub.f32 %v1047, %v1053
        %v1058 = vsub.f32 %v1048, %v1053
        %v1059 = vsub.f32 %v1049, %v1056
        %v1060 = vsub.f32 %v1050, %v1056
        %v1061 = vmul.f32 %v1057, 1.442695
        %v1062 = vpow.pop %v1061
        %v1063 = vmul.f32 %v1058, 1.442695
        %v1064 = vpow.pop %v1063
        %v1065 = vmul.f32 %v1059, 1.442695
        %v1066 = vpow.pop %v1065
        %v1067 = vmul.f32 %v1060, 1.442695
        %v1068 = vpow.pop %v1067
        %v1069 = vadd.f32 %v1062, %v1064
        %1070 = vadd.xlane.f32.xlu0 %v1069
        %v1071 = vpop.xlane.xlu0 %1070
        %v1072 = vadd.f32 %v1066, %v1068
        %1073 = vadd.xlane.f32.xlu0 %v1072
        %v1074 = vpop.xlane.xlu0 %1073
        %v1075 = vrcp.pop %v1071
        %v1076 = vrcp.pop %v1074
        %v1077 = vmul.f32 %v1062, %v1075
        %v1078 = vmul.f32 %v1064, %v1075
        %v1079 = vmul.f32 %v1066, %v1076
        %v1080 = vmul.f32 %v1068, %v1076
        %v1081 = vpack.c.bf16 %v1079, %v1077
        %v1082 = vpack.c.bf16 %v1080, %v1078
        %1083 = vmatpush.bf16.msra.mxu0 %v1004
        %1084 = vmatpush.bf16.msra.mxu0 %v1003
        %1085 = vmatpush.bf16.msra.mxu0 %v1002
        %1086 = vmatpush.bf16.msra.mxu0 %v1001
        %1087 = vmatpush.bf16.msra.mxu0 %v1000
        %1088 = vmatpush.bf16.msra.mxu0 %v999
        %1089 = vmatpush.bf16.msra.mxu0 %v998
        %1090 = vmatpush.bf16.msra.mxu0 %v997
        %1091 = vmatmul.bf16.gmra.mxu0 %v1081
        %v1092 = vpop.f32.mrf.mxu0
        %v1093 = vadd.f32 0.0, %v1092
        %v1094 = vpop.f32.mrf.mxu0
        %v1095 = vadd.f32 0.0, %v1094
        %1096 = vdwg.mxu0
        %1097 = vmatpush.bf16.msra.mxu0 %v1012
        %1098 = vmatpush.bf16.msra.mxu0 %v1011
        %1099 = vmatpush.bf16.msra.mxu0 %v1010
        %1100 = vmatpush.bf16.msra.mxu0 %v1009
        %1101 = vmatpush.bf16.msra.mxu0 %v1008
        %1102 = vmatpush.bf16.msra.mxu0 %v1007
        %1103 = vmatpush.bf16.msra.mxu0 %v1006
        %1104 = vmatpush.bf16.msra.mxu0 %v1005
        %1105 = vmatmul.bf16.gmra.mxu0 %v1082
        %v1106 = vpop.f32.mrf.mxu0
        %v1107 = vadd.f32 %v1093, %v1106
        %v1108 = vpop.f32.mrf.mxu0
        %v1109 = vadd.f32 %v1095, %v1108
        %1110 = vdwg.mxu0
        %v1111 = vld [vmem:[%s4] sm:$0xf]
        %v1112 = vld [vmem:[%s4 + $0x4] sm:$0xf]
        %v1113 = vld [vmem:[%s4 + $0x8] sm:$0xf]
        %v1114 = vld [vmem:[%s4 + $0xc] sm:$0xf]
        %v1115 = vld [vmem:[%s4 + $0x10] sm:$0xf]
        %v1116 = vld [vmem:[%s4 + $0x14] sm:$0xf]
        %v1117 = vld [vmem:[%s4 + $0x18] sm:$0xf]
        %v1118 = vld [vmem:[%s4 + $0x1c] sm:$0xf]
        %v1119 = vld [vmem:[%s4 + $0x20] sm:$0xf]
        %v1120 = vld [vmem:[%s4 + $0x24] sm:$0xf]
        %v1121 = vld [vmem:[%s4 + $0x28] sm:$0xf]
        %v1122 = vld [vmem:[%s4 + $0x2c] sm:$0xf]
        %v1123 = vld [vmem:[%s4 + $0x30] sm:$0xf]
        %v1124 = vld [vmem:[%s4 + $0x34] sm:$0xf]
        %v1125 = vld [vmem:[%s4 + $0x38] sm:$0xf]
        %v1126 = vld [vmem:[%s4 + $0x3c] sm:$0xf]
        %v1127 = vpack.c.bf16 %v1109, %v1107
        %v1128 = vld [vmem:[%s5] sm:$0x1]
        %v1130 = vperm.slane %v1128, 0
        %v1148 = vunpack.c.l.b16 %v1111
        %v1149 = vunpack.c.l.b16 %v1112
        %v1150 = vunpack.c.l.b16 %v1113
        %v1151 = vunpack.c.l.b16 %v1114
        %v1152 = vunpack.c.l.b16 %v1115
        %v1153 = vunpack.c.l.b16 %v1116
        %v1154 = vunpack.c.l.b16 %v1117
        %v1155 = vunpack.c.l.b16 %v1118
        %v1156 = vunpack.c.l.b16 %v1119
        %v1157 = vunpack.c.l.b16 %v1120
        %v1158 = vunpack.c.l.b16 %v1121
        %v1159 = vunpack.c.l.b16 %v1122
        %v1160 = vunpack.c.l.b16 %v1123
        %v1161 = vunpack.c.l.b16 %v1124
        %v1162 = vunpack.c.l.b16 %v1125
        %v1163 = vunpack.c.l.b16 %v1126
        %v1164 = vpack.c.b16 %v1149, %v1148
        %v1165 = vpack.c.b16 %v1151, %v1150
        %v1166 = vpack.c.b16 %v1153, %v1152
        %v1167 = vpack.c.b16 %v1155, %v1154
        %v1168 = vpack.c.b16 %v1157, %v1156
        %v1169 = vpack.c.b16 %v1159, %v1158
        %v1170 = vpack.c.b16 %v1161, %v1160
        %v1171 = vpack.c.b16 %v1163, %v1162
        %1180 = vmatpush.bf16.msra.mxu0 %v1171
        %1181 = vmatpush.bf16.msra.mxu0 %v1170
        %1182 = vmatpush.bf16.msra.mxu0 %v1169
        %1183 = vmatpush.bf16.msra.mxu0 %v1168
        %1184 = vmatpush.bf16.msra.mxu0 %v1167
        %1185 = vmatpush.bf16.msra.mxu0 %v1166
        %1186 = vmatpush.bf16.msra.mxu0 %v1165
        %1187 = vmatpush.bf16.msra.mxu0 %v1164
        %1188 = vmatmul.bf16.gmra.mxu0 %v1127
        %v1189 = vpop.f32.mrf.mxu0
        %v1190 = vadd.f32 %v1130, %v1189
        %v1191 = vpop.f32.mrf.mxu0
        %v1192 = vadd.f32 %v1130, %v1191
        %1193 = vdwg.mxu0
        %1194 = vst [vmem:[%s660] sm:$0xff] %v1190
        %1195 = vst [vmem:[%s660 + $0x8] sm:$0xff] %v1192
        %1196 = vmax.xlane.f32.xlu0 %v1190
        %v1197 = vpop.xlane.xlu0 %1196
        %1198 = vmax.xlane.f32.xlu0 %v1192
        %v1199 = vpop.xlane.xlu0 %1198
        %v1200 = vsub.f32 %v1190, %v1197
        %v1201 = vsub.f32 %v1192, %v1199
        %v1202 = vmul.f32 %v1200, 1.442695
        %v1203 = vpow.pop %v1202
        %v1204 = vmul.f32 %v1201, 1.442695
        %v1205 = vpow.pop %v1204
        %1206 = vadd.xlane.f32.xlu0 %v1203
        %v1207 = vpop.xlane.xlu0 %1206
        %1208 = vadd.xlane.f32.xlu0 %v1205
        %v1209 = vpop.xlane.xlu0 %1208
        %v1210 = vrcp.pop %v1207
        %v1211 = vrcp.pop %v1209
        %v1212 = vmul.f32 %v1203, %v1210
        %v1213 = vmul.f32 %v1205, %v1211
        %v1214 = vld [vmem:[%s6] sm:$0xf]
        %v1215 = vld [vmem:[%s6 + $0x4] sm:$0xf]
        %v1216 = vld [vmem:[%s6 + $0x8] sm:$0xf]
        %v1217 = vld [vmem:[%s6 + $0xc] sm:$0xf]
        %v1218 = vld [vmem:[%s6 + $0x10] sm:$0xf]
        %v1219 = vld [vmem:[%s6 + $0x14] sm:$0xf]
        %v1220 = vld [vmem:[%s6 + $0x18] sm:$0xf]
        %v1221 = vld [vmem:[%s6 + $0x1c] sm:$0xf]
        %v1222 = vld [vmem:[%s6 + $0x20] sm:$0xf]
        %v1223 = vld [vmem:[%s6 + $0x24] sm:$0xf]
        %v1224 = vld [vmem:[%s6 + $0x28] sm:$0xf]
        %v1225 = vld [vmem:[%s6 + $0x2c] sm:$0xf]
        %v1226 = vld [vmem:[%s6 + $0x30] sm:$0xf]
        %v1227 = vld [vmem:[%s6 + $0x34] sm:$0xf]
        %v1228 = vld [vmem:[%s6 + $0x38] sm:$0xf]
        %v1229 = vld [vmem:[%s6 + $0x3c] sm:$0xf]
        %v1230 = vpack.c.bf16 %v1213, %v1212
        %v1231 = vld [vmem:[%s7] sm:$0xff]
        %v1232 = vld [vmem:[%s7 + $0x8] sm:$0xff]
        %v1249 = vunpack.c.l.b16 %v1214
        %v1250 = vunpack.c.l.b16 %v1215
        %v1251 = vunpack.c.l.b16 %v1216
        %v1252 = vunpack.c.l.b16 %v1217
        %v1253 = vunpack.c.l.b16 %v1218
        %v1254 = vunpack.c.l.b16 %v1219
        %v1255 = vunpack.c.l.b16 %v1220
        %v1256 = vunpack.c.l.b16 %v1221
        %v1257 = vunpack.c.l.b16 %v1222
        %v1258 = vunpack.c.l.b16 %v1223
        %v1259 = vunpack.c.l.b16 %v1224
        %v1260 = vunpack.c.l.b16 %v1225
        %v1261 = vunpack.c.l.b16 %v1226
        %v1262 = vunpack.c.l.b16 %v1227
        %v1263 = vunpack.c.l.b16 %v1228
        %v1264 = vunpack.c.l.b16 %v1229
        %v1265 = vpack.c.b16 %v1250, %v1249
        %v1266 = vpack.c.b16 %v1252, %v1251
        %v1267 = vpack.c.b16 %v1254, %v1253
        %v1268 = vpack.c.b16 %v1256, %v1255
        %v1269 = vpack.c.b16 %v1258, %v1257
        %v1270 = vpack.c.b16 %v1260, %v1259
        %v1271 = vpack.c.b16 %v1262, %v1261
        %v1272 = vpack.c.b16 %v1264, %v1263
        %1281 = vmatpush.bf16.msra.mxu0 %v1272
        %1282 = vmatpush.bf16.msra.mxu0 %v1271
        %1283 = vmatpush.bf16.msra.mxu0 %v1270
        %1284 = vmatpush.bf16.msra.mxu0 %v1269
        %1285 = vmatpush.bf16.msra.mxu0 %v1268
        %1286 = vmatpush.bf16.msra.mxu0 %v1267
        %1287 = vmatpush.bf16.msra.mxu0 %v1266
        %1288 = vmatpush.bf16.msra.mxu0 %v1265
        %1289 = vmatmul.bf16.gmra.mxu0 %v1230
        %v1290 = vpop.f32.mrf.mxu0
        %v1291 = vadd.f32 %v1231, %v1290
        %v1292 = vpop.f32.mrf.mxu0
        %v1293 = vadd.f32 %v1232, %v1292
        %1294 = vdwg.mxu0
        %v1295 = vld [vmem:[%s8] sm:$0xf]
        %v1296 = vld [vmem:[%s8 + $0x4] sm:$0xf]
        %v1297 = vld [vmem:[%s8 + $0x8] sm:$0xf]
        %v1298 = vld [vmem:[%s8 + $0xc] sm:$0xf]
        %v1299 = vld [vmem:[%s8 + $0x10] sm:$0xf]
        %v1300 = vld [vmem:[%s8 + $0x14] sm:$0xf]
        %v1301 = vld [vmem:[%s8 + $0x18] sm:$0xf]
        %v1302 = vld [vmem:[%s8 + $0x1c] sm:$0xf]
        %v1303 = vld [vmem:[%s8 + $0x20] sm:$0xf]
        %v1304 = vld [vmem:[%s8 + $0x24] sm:$0xf]
        %v1305 = vld [vmem:[%s8 + $0x28] sm:$0xf]
        %v1306 = vld [vmem:[%s8 + $0x2c] sm:$0xf]
        %v1307 = vld [vmem:[%s8 + $0x30] sm:$0xf]
        %v1308 = vld [vmem:[%s8 + $0x34] sm:$0xf]
        %v1309 = vld [vmem:[%s8 + $0x38] sm:$0xf]
        %v1310 = vld [vmem:[%s8 + $0x3c] sm:$0xf]
        %v1311 = vpack.c.bf16 %v1293, %v1291
        %v1312 = vld [vmem:[%s9] sm:$0x1]
        %v1314 = vperm.slane %v1312, 0
        %v1332 = vunpack.c.l.b16 %v1295
        %v1333 = vunpack.c.l.b16 %v1296
        %v1334 = vunpack.c.l.b16 %v1297
        %v1335 = vunpack.c.l.b16 %v1298
        %v1336 = vunpack.c.l.b16 %v1299
        %v1337 = vunpack.c.l.b16 %v1300
        %v1338 = vunpack.c.l.b16 %v1301
        %v1339 = vunpack.c.l.b16 %v1302
        %v1340 = vunpack.c.l.b16 %v1303
        %v1341 = vunpack.c.l.b16 %v1304
        %v1342 = vunpack.c.l.b16 %v1305
        %v1343 = vunpack.c.l.b16 %v1306
        %v1344 = vunpack.c.l.b16 %v1307
        %v1345 = vunpack.c.l.b16 %v1308
        %v1346 = vunpack.c.l.b16 %v1309
        %v1347 = vunpack.c.l.b16 %v1310
        %v1348 = vpack.c.b16 %v1333, %v1332
        %v1349 = vpack.c.b16 %v1335, %v1334
        %v1350 = vpack.c.b16 %v1337, %v1336
        %v1351 = vpack.c.b16 %v1339, %v1338
        %v1352 = vpack.c.b16 %v1341, %v1340
        %v1353 = vpack.c.b16 %v1343, %v1342
        %v1354 = vpack.c.b16 %v1345, %v1344
        %v1355 = vpack.c.b16 %v1347, %v1346
        %1364 = vmatpush.bf16.msra.mxu0 %v1355
        %1365 = vmatpush.bf16.msra.mxu0 %v1354
        %1366 = vmatpush.bf16.msra.mxu0 %v1353
        %1367 = vmatpush.bf16.msra.mxu0 %v1352
        %1368 = vmatpush.bf16.msra.mxu0 %v1351
        %1369 = vmatpush.bf16.msra.mxu0 %v1350
        %1370 = vmatpush.bf16.msra.mxu0 %v1349
        %1371 = vmatpush.bf16.msra.mxu0 %v1348
        %1372 = vmatmul.bf16.gmra.mxu0 %v1311
        %v1373 = vpop.f32.mrf.mxu0
        %v1374 = vadd.f32 %v1314, %v1373
        %v1375 = vpop.f32.mrf.mxu0
        %v1376 = vadd.f32 %v1314, %v1375
        %1377 = vdwg.mxu0
        %v1378 = vmax.f32 %v1374, 0.0
        %v1379 = vmax.f32 %v1376, 0.0
        %v1380 = vld [vmem:[%s10] sm:$0xf]
        %v1381 = vld [vmem:[%s10 + $0x4] sm:$0xf]
        %v1382 = vld [vmem:[%s10 + $0x8] sm:$0xf]
        %v1383 = vld [vmem:[%s10 + $0xc] sm:$0xf]
        %v1384 = vld [vmem:[%s10 + $0x10] sm:$0xf]
        %v1385 = vld [vmem:[%s10 + $0x14] sm:$0xf]
        %v1386 = vld [vmem:[%s10 + $0x18] sm:$0xf]
        %v1387 = vld [vmem:[%s10 + $0x1c] sm:$0xf]
        %v1388 = vld [vmem:[%s10 + $0x20] sm:$0xf]
        %v1389 = vld [vmem:[%s10 + $0x24] sm:$0xf]
        %v1390 = vld [vmem:[%s10 + $0x28] sm:$0xf]
        %v1391 = vld [vmem:[%s10 + $0x2c] sm:$0xf]
        %v1392 = vld [vmem:[%s10 + $0x30] sm:$0xf]
        %v1393 = vld [vmem:[%s10 + $0x34] sm:$0xf]
        %v1394 = vld [vmem:[%s10 + $0x38] sm:$0xf]
        %v1395 = vld [vmem:[%s10 + $0x3c] sm:$0xf]
        %v1396 = vpack.c.bf16 %v1379, %v1378
        %v1397 = vld [vmem:[%s11] sm:$0x1]
        %v1399 = vperm.slane %v1397, 0
        %v1417 = vunpack.c.l.b16 %v1380
        %v1418 = vunpack.c.l.b16 %v1381
        %v1419 = vunpack.c.l.b16 %v1382
        %v1420 = vunpack.c.l.b16 %v1383
        %v1421 = vunpack.c.l.b16 %v1384
        %v1422 = vunpack.c.l.b16 %v1385
        %v1423 = vunpack.c.l.b16 %v1386
        %v1424 = vunpack.c.l.b16 %v1387
        %v1425 = vunpack.c.l.b16 %v1388
        %v1426 = vunpack.c.l.b16 %v1389
        %v1427 = vunpack.c.l.b16 %v1390
        %v1428 = vunpack.c.l.b16 %v1391
        %v1429 = vunpack.c.l.b16 %v1392
        %v1430 = vunpack.c.l.b16 %v1393
        %v1431 = vunpack.c.l.b16 %v1394
        %v1432 = vunpack.c.l.b16 %v1395
        %v1433 = vpack.c.b16 %v1418, %v1417
        %v1434 = vpack.c.b16 %v1420, %v1419
        %v1435 = vpack.c.b16 %v1422, %v1421
        %v1436 = vpack.c.b16 %v1424, %v1423
        %v1437 = vpack.c.b16 %v1426, %v1425
        %v1438 = vpack.c.b16 %v1428, %v1427
        %v1439 = vpack.c.b16 %v1430, %v1429
        %v1440 = vpack.c.b16 %v1432, %v1431
        %1449 = vmatpush.bf16.msra.mxu0 %v1440
        %1450 = vmatpush.bf16.msra.mxu0 %v1439
        %1451 = vmatpush.bf16.msra.mxu0 %v1438
        %1452 = vmatpush.bf16.msra.mxu0 %v1437
        %1453 = vmatpush.bf16.msra.mxu0 %v1436
        %1454 = vmatpush.bf16.msra.mxu0 %v1435
        %1455 = vmatpush.bf16.msra.mxu0 %v1434
        %1456 = vmatpush.bf16.msra.mxu0 %v1433
        %1457 = vmatmul.bf16.gmra.mxu0 %v1396
        %v1458 = vpop.f32.mrf.mxu0
        %v1459 = vadd.f32 %v1399, %v1458
        %v1460 = vpop.f32.mrf.mxu0
        %v1461 = vadd.f32 %v1399, %v1460
        %1462 = vdwg.mxu0
        %v1463 = vld [vmem:[%s12] sm:$0xf]
        %v1464 = vld [vmem:[%s12 + $0x4] sm:$0xf]
        %v1465 = vld [vmem:[%s12 + $0x8] sm:$0xf]
        %v1466 = vld [vmem:[%s12 + $0xc] sm:$0xf]
        %v1467 = vld [vmem:[%s12 + $0x10] sm:$0xf]
        %v1468 = vld [vmem:[%s12 + $0x14] sm:$0xf]
        %v1469 = vld [vmem:[%s12 + $0x18] sm:$0xf]
        %v1470 = vld [vmem:[%s12 + $0x1c] sm:$0xf]
        %v1471 = vld [vmem:[%s12 + $0x20] sm:$0xf]
        %v1472 = vld [vmem:[%s12 + $0x24] sm:$0xf]
        %v1473 = vld [vmem:[%s12 + $0x28] sm:$0xf]
        %v1474 = vld [vmem:[%s12 + $0x2c] sm:$0xf]
        %v1475 = vld [vmem:[%s12 + $0x30] sm:$0xf]
        %v1476 = vld [vmem:[%s12 + $0x34] sm:$0xf]
        %v1477 = vld [vmem:[%s12 + $0x38] sm:$0xf]
        %v1478 = vld [vmem:[%s12 + $0x3c] sm:$0xf]
        %v1479 = vpack.c.bf16 %v1461, %v1459
        %v1480 = vld [vmem:[%s13] sm:$0x1]
        %v1482 = vperm.slane %v1480, 0
        %v1500 = vunpack.c.l.b16 %v1463
        %v1501 = vunpack.c.l.b16 %v1464
        %v1502 = vunpack.c.l.b16 %v1465
        %v1503 = vunpack.c.l.b16 %v1466
        %v1504 = vunpack.c.l.b16 %v1467
        %v1505 = vunpack.c.l.b16 %v1468
        %v1506 = vunpack.c.l.b16 %v1469
        %v1507 = vunpack.c.l.b16 %v1470
        %v1508 = vunpack.c.l.b16 %v1471
        %v1509 = vunpack.c.l.b16 %v1472
        %v1510 = vunpack.c.l.b16 %v1473
        %v1511 = vunpack.c.l.b16 %v1474
        %v1512 = vunpack.c.l.b16 %v1475
        %v1513 = vunpack.c.l.b16 %v1476
        %v1514 = vunpack.c.l.b16 %v1477
        %v1515 = vunpack.c.l.b16 %v1478
        %v1516 = vpack.c.b16 %v1501, %v1500
        %v1517 = vpack.c.b16 %v1503, %v1502
        %v1518 = vpack.c.b16 %v1505, %v1504
        %v1519 = vpack.c.b16 %v1507, %v1506
        %v1520 = vpack.c.b16 %v1509, %v1508
        %v1521 = vpack.c.b16 %v1511, %v1510
        %v1522 = vpack.c.b16 %v1513, %v1512
        %v1523 = vpack.c.b16 %v1515, %v1514
        %1532 = vmatpush.bf16.msra.mxu0 %v1523
        %1533 = vmatpush.bf16.msra.mxu0 %v1522
        %1534 = vmatpush.bf16.msra.mxu0 %v1521
        %1535 = vmatpush.bf16.msra.mxu0 %v1520
        %1536 = vmatpush.bf16.msra.mxu0 %v1519
        %1537 = vmatpush.bf16.msra.mxu0 %v1518
        %1538 = vmatpush.bf16.msra.mxu0 %v1517
        %1539 = vmatpush.bf16.msra.mxu0 %v1516
        %1540 = vmatmul.bf16.gmra.mxu0 %v1479
        %v1541 = vpop.f32.mrf.mxu0
        %v1542 = vadd.f32 %v1482, %v1541
        %v1543 = vpop.f32.mrf.mxu0
        %v1544 = vadd.f32 %v1482, %v1543
        %1545 = vdwg.mxu0
        %1546 = vst [vmem:[%s653] sm:$0xff] %v1542
        %1547 = vst [vmem:[%s653 + $0x8] sm:$0xff] %v1544
        %v1548 = vld [vmem:[%s14] sm:$0xf]
        %v1549 = vld [vmem:[%s14 + $0x4] sm:$0xf]
        %v1550 = vld [vmem:[%s14 + $0x8] sm:$0xf]
        %v1551 = vld [vmem:[%s14 + $0xc] sm:$0xf]
        %v1552 = vld [vmem:[%s14 + $0x10] sm:$0xf]
        %v1553 = vld [vmem:[%s14 + $0x14] sm:$0xf]
        %v1554 = vld [vmem:[%s14 + $0x18] sm:$0xf]
        %v1555 = vld [vmem:[%s14 + $0x1c] sm:$0xf]
        %v1556 = vld [vmem:[%s14 + $0x20] sm:$0xf]
        %v1557 = vld [vmem:[%s14 + $0x24] sm:$0xf]
        %v1558 = vld [vmem:[%s14 + $0x28] sm:$0xf]
        %v1559 = vld [vmem:[%s14 + $0x2c] sm:$0xf]
        %v1560 = vld [vmem:[%s14 + $0x30] sm:$0xf]
        %v1561 = vld [vmem:[%s14 + $0x34] sm:$0xf]
        %v1562 = vld [vmem:[%s14 + $0x38] sm:$0xf]
        %v1563 = vld [vmem:[%s14 + $0x3c] sm:$0xf]
        %v1564 = vld [vmem:[%s15] sm:$0xf]
        %v1565 = vld [vmem:[%s15 + $0x4] sm:$0xf]
        %v1566 = vld [vmem:[%s15 + $0x8] sm:$0xf]
        %v1567 = vld [vmem:[%s15 + $0xc] sm:$0xf]
        %v1568 = vld [vmem:[%s15 + $0x10] sm:$0xf]
        %v1569 = vld [vmem:[%s15 + $0x14] sm:$0xf]
        %v1570 = vld [vmem:[%s15 + $0x18] sm:$0xf]
        %v1571 = vld [vmem:[%s15 + $0x1c] sm:$0xf]
        %v1572 = vld [vmem:[%s15 + $0x20] sm:$0xf]
        %v1573 = vld [vmem:[%s15 + $0x24] sm:$0xf]
        %v1574 = vld [vmem:[%s15 + $0x28] sm:$0xf]
        %v1575 = vld [vmem:[%s15 + $0x2c] sm:$0xf]
        %v1576 = vld [vmem:[%s15 + $0x30] sm:$0xf]
        %v1577 = vld [vmem:[%s15 + $0x34] sm:$0xf]
        %v1578 = vld [vmem:[%s15 + $0x38] sm:$0xf]
        %v1579 = vld [vmem:[%s15 + $0x3c] sm:$0xf]
        %v1596 = vunpack.c.l.b16 %v1564
        %v1597 = vunpack.c.l.b16 %v1565
        %v1598 = vunpack.c.l.b16 %v1566
        %v1599 = vunpack.c.l.b16 %v1567
        %v1600 = vunpack.c.l.b16 %v1568
        %v1601 = vunpack.c.l.b16 %v1569
        %v1602 = vunpack.c.l.b16 %v1570
        %v1603 = vunpack.c.l.b16 %v1571
        %v1604 = vunpack.c.l.b16 %v1572
        %v1605 = vunpack.c.l.b16 %v1573
        %v1606 = vunpack.c.l.b16 %v1574
        %v1607 = vunpack.c.l.b16 %v1575
        %v1608 = vunpack.c.l.b16 %v1576
        %v1609 = vunpack.c.l.b16 %v1577
        %v1610 = vunpack.c.l.b16 %v1578
        %v1611 = vunpack.c.l.b16 %v1579
        %v1612 = vpack.c.b16 %v1597, %v1596
        %v1613 = vpack.c.b16 %v1599, %v1598
        %v1614 = vpack.c.b16 %v1601, %v1600
        %v1615 = vpack.c.b16 %v1603, %v1602
        %v1616 = vpack.c.b16 %v1605, %v1604
        %v1617 = vpack.c.b16 %v1607, %v1606
        %v1618 = vpack.c.b16 %v1609, %v1608
        %v1619 = vpack.c.b16 %v1611, %v1610
        %1628 = vmatpush.bf16.msra.mxu0 %v1619
        %1629 = vmatpush.bf16.msra.mxu0 %v1618
        %1630 = vmatpush.bf16.msra.mxu0 %v1617
        %1631 = vmatpush.bf16.msra.mxu0 %v1616
        %1632 = vmatpush.bf16.msra.mxu0 %v1615
        %1633 = vmatpush.bf16.msra.mxu0 %v1614
        %1634 = vmatpush.bf16.msra.mxu0 %v1613
        %1635 = vmatpush.bf16.msra.mxu0 %v1612
        %1636 = vmatmul.bf16.gmra.mxu0 %v1127
        %v1637 = vpop.f32.mrf.mxu0
        %v1638 = vadd.f32 0.0, %v1637
        %v1639 = vpop.f32.mrf.mxu0
        %v1640 = vadd.f32 0.0, %v1639
        %1641 = vdwg.mxu0
        %v1658 = vunpack.c.l.b16 %v1548
        %v1659 = vunpack.c.l.b16 %v1549
        %v1660 = vunpack.c.l.b16 %v1550
        %v1661 = vunpack.c.l.b16 %v1551
        %v1662 = vunpack.c.l.b16 %v1552
        %v1663 = vunpack.c.l.b16 %v1553
        %v1664 = vunpack.c.l.b16 %v1554
        %v1665 = vunpack.c.l.b16 %v1555
        %v1666 = vunpack.c.l.b16 %v1556
        %v1667 = vunpack.c.l.b16 %v1557
        %v1668 = vunpack.c.l.b16 %v1558
        %v1669 = vunpack.c.l.b16 %v1559
        %v1670 = vunpack.c.l.b16 %v1560
        %v1671 = vunpack.c.l.b16 %v1561
        %v1672 = vunpack.c.l.b16 %v1562
        %v1673 = vunpack.c.l.b16 %v1563
        %v1674 = vpack.c.b16 %v1659, %v1658
        %v1675 = vpack.c.b16 %v1661, %v1660
        %v1676 = vpack.c.b16 %v1663, %v1662
        %v1677 = vpack.c.b16 %v1665, %v1664
        %v1678 = vpack.c.b16 %v1667, %v1666
        %v1679 = vpack.c.b16 %v1669, %v1668
        %v1680 = vpack.c.b16 %v1671, %v1670
        %v1681 = vpack.c.b16 %v1673, %v1672
        %1690 = vmatpush.bf16.msra.mxu0 %v1681
        %1691 = vmatpush.bf16.msra.mxu0 %v1680
        %1692 = vmatpush.bf16.msra.mxu0 %v1679
        %1693 = vmatpush.bf16.msra.mxu0 %v1678
        %1694 = vmatpush.bf16.msra.mxu0 %v1677
        %1695 = vmatpush.bf16.msra.mxu0 %v1676
        %1696 = vmatpush.bf16.msra.mxu0 %v1675
        %1697 = vmatpush.bf16.msra.mxu0 %v1674
        %1698 = vmatmul.bf16.gmra.mxu0 %v1479
        %v1699 = vpop.f32.mrf.mxu0
        %v1700 = vadd.f32 %v1638, %v1699
        %v1701 = vpop.f32.mrf.mxu0
        %v1702 = vadd.f32 %v1640, %v1701
        %1703 = vdwg.mxu0
        %v1704 = vld [vmem:[%s16] sm:$0x1]
        %v1706 = vperm.slane %v1704, 0
        %v1708 = vadd.f32 %v1700, %v1706
        %v1709 = vadd.f32 %v1702, %v1706
        %v1710 = vxor.u32 %v1708, 2147483648
        %v1711 = vxor.u32 %v1709, 2147483648
        %v1712 = vmul.f32 %v1710, 1.442695
        %v1713 = vpow.pop %v1712
        %v1714 = vmul.f32 %v1711, 1.442695
        %v1715 = vpow.pop %v1714
        %v1716 = vadd.f32 %v1713, 1.0
        %v1717 = vadd.f32 %v1715, 1.0
        %v1718 = vrcp.pop %v1716
        %v1719 = vmul.f32 %v1716, %v1718
        %v1720 = vsub.f32 1.0, %v1719
        %v1721 = vmul.f32 %v1718, %v1720
        %v1722 = vadd.f32 %v1718, %v1721
        %vm1723 = vweird.f32 %v1716
        %vm1724 = vweird.f32 %v1718
        %vm1725 = vmor %vm1723, %vm1724
        %v1726 = vsel %vm1725, %v1718, %v1722
        %v1727 = vand.u32 2147483647, %v1716
        %vm1728 = vcmp.eq.f32.partialorder %v1727, 8.507059e+37
        %v1729 = vand.u32 %v1716, 2147483648
        %v1730 = vor.u32 1.1754944e-38, %v1729
        %v1731 = vsel %vm1728, %v1730, %v1726
        %v1732 = vmul.f32 1.0, %v1731
        %v1733 = vrcp.pop %v1717
        %v1734 = vmul.f32 %v1717, %v1733
        %v1735 = vsub.f32 1.0, %v1734
        %v1736 = vmul.f32 %v1733, %v1735
        %v1737 = vadd.f32 %v1733, %v1736
        %vm1738 = vweird.f32 %v1717
        %vm1739 = vweird.f32 %v1733
        %vm1740 = vmor %vm1738, %vm1739
        %v1741 = vsel %vm1740, %v1733, %v1737
        %v1742 = vand.u32 2147483647, %v1717
        %vm1743 = vcmp.eq.f32.partialorder %v1742, 8.507059e+37
        %v1744 = vand.u32 %v1717, 2147483648
        %v1745 = vor.u32 1.1754944e-38, %v1744
        %v1746 = vsel %vm1743, %v1745, %v1741
        %v1747 = vmul.f32 1.0, %v1746
        %v1748 = vmul.f32 %v1732, %v1107
        %v1749 = vmul.f32 %v1747, %v1109
        %v1750 = vsub.f32 1.0, %v1732
        %v1751 = vsub.f32 1.0, %v1747
        %v1752 = vmul.f32 %v1750, %v1459
        %v1753 = vmul.f32 %v1751, %v1461
        %v1754 = vadd.f32 %v1748, %v1752
        %v1755 = vadd.f32 %v1749, %v1753
        %v1756 = vld [vmem:[%s17] sm:$0xf]
        %v1757 = vld [vmem:[%s17 + $0x4] sm:$0xf]
        %v1758 = vld [vmem:[%s17 + $0x8] sm:$0xf]
        %v1759 = vld [vmem:[%s17 + $0xc] sm:$0xf]
        %v1760 = vld [vmem:[%s17 + $0x10] sm:$0xf]
        %v1761 = vld [vmem:[%s17 + $0x14] sm:$0xf]
        %v1762 = vld [vmem:[%s17 + $0x18] sm:$0xf]
        %v1763 = vld [vmem:[%s17 + $0x1c] sm:$0xf]
        %v1764 = vld [vmem:[%s17 + $0x20] sm:$0xf]
        %v1765 = vld [vmem:[%s17 + $0x24] sm:$0xf]
        %v1766 = vld [vmem:[%s17 + $0x28] sm:$0xf]
        %v1767 = vld [vmem:[%s17 + $0x2c] sm:$0xf]
        %v1768 = vld [vmem:[%s17 + $0x30] sm:$0xf]
        %v1769 = vld [vmem:[%s17 + $0x34] sm:$0xf]
        %v1770 = vld [vmem:[%s17 + $0x38] sm:$0xf]
        %v1771 = vld [vmem:[%s17 + $0x3c] sm:$0xf]
        %v1772 = vpack.c.bf16 %v1755, %v1754
        %v1773 = vld [vmem:[%s18] sm:$0x1]
        %v1775 = vperm.slane %v1773, 0
        %v1793 = vunpack.c.l.b16 %v1756
        %v1794 = vunpack.c.l.b16 %v1757
        %v1795 = vunpack.c.l.b16 %v1758
        %v1796 = vunpack.c.l.b16 %v1759
        %v1797 = vunpack.c.l.b16 %v1760
        %v1798 = vunpack.c.l.b16 %v1761
        %v1799 = vunpack.c.l.b16 %v1762
        %v1800 = vunpack.c.l.b16 %v1763
        %v1801 = vunpack.c.l.b16 %v1764
        %v1802 = vunpack.c.l.b16 %v1765
        %v1803 = vunpack.c.l.b16 %v1766
        %v1804 = vunpack.c.l.b16 %v1767
        %v1805 = vunpack.c.l.b16 %v1768
        %v1806 = vunpack.c.l.b16 %v1769
        %v1807 = vunpack.c.l.b16 %v1770
        %v1808 = vunpack.c.l.b16 %v1771
        %v1809 = vpack.c.b16 %v1794, %v1793
        %v1810 = vpack.c.b16 %v1796, %v1795
        %v1811 = vpack.c.b16 %v1798, %v1797
        %v1812 = vpack.c.b16 %v1800, %v1799
        %v1813 = vpack.c.b16 %v1802, %v1801
        %v1814 = vpack.c.b16 %v1804, %v1803
        %v1815 = vpack.c.b16 %v1806, %v1805
        %v1816 = vpack.c.b16 %v1808, %v1807
        %1825 = vmatpush.bf16.msra.mxu0 %v1816
        %1826 = vmatpush.bf16.msra.mxu0 %v1815
        %1827 = vmatpush.bf16.msra.mxu0 %v1814
        %1828 = vmatpush.bf16.msra.mxu0 %v1813
        %1829 = vmatpush.bf16.msra.mxu0 %v1812
        %1830 = vmatpush.bf16.msra.mxu0 %v1811
        %1831 = vmatpush.bf16.msra.mxu0 %v1810
        %1832 = vmatpush.bf16.msra.mxu0 %v1809
        %1833 = vmatmul.bf16.gmra.mxu0 %v1772
        %v1834 = vpop.f32.mrf.mxu0
        %v1835 = vadd.f32 %v1775, %v1834
        %v1836 = vpop.f32.mrf.mxu0
        %v1837 = vadd.f32 %v1775, %v1836
        %1838 = vdwg.mxu0
        %1839 = vst [vmem:[%s677] sm:$0xff] %v1835
        %1840 = vst [vmem:[%s677 + $0x8] sm:$0xff] %v1837
        %s1841 = sand.u32 %s451, 1
        %s1842 = scalar_lea.sflag [#allocation3], %s1841
        %s1843 = sand.u32 %s451, 1
        %s1844 = smul.addr %s1843, 16
        %s1845 = scalar_lea.vmem [#allocation2], %s1844
        %s1846 = sand.u32 %s477, 1
        %s1847 = scalar_lea.sflag [#allocation5], %s1846
        %s1848 = sand.u32 %s477, 1
        %s1849 = smul.addr %s1848, 16
        %s1850 = scalar_lea.vmem [#allocation4], %s1849
        %p1851 = scmp.lt.s32.totalorder %s39, 1
        %s1852 = scalar_select %p1851, %s39, 1
        %s1853 = smul.addr %s1852, 2
        %s1854 = smul.addr %s1853, 8
        %s1855 = scalar_lea.vmem %s21, %s1854
        // Predicated region
        $region97: #{busnet_finetune_forward.1} parent=95 // pred_check
          %p1856 = pneg %p461
        $region98: #{busnet_finetune_forward.1} parent=95 // pred_check_branch
          %1858 = sbr.rel (%p1856) target = $region100
        $region99: #{busnet_finetune_forward.1} parent=95 // pred_region
          %1860 = vsyncadd %s1842, 0
          %s1861 = smul.addr %s39, 2
          %s1862 = smul.addr %s1861, 8
          %s1863 = scalar_lea.hbm %s19, %s1862
          %s1864 = sshll.u32 %s1845, 4
          %s1865 = int_to_ptr.vmem [resolvable:$true] %s1864
          %s1866 = sshll.u32 %s1863, 4
          %s1867 = int_to_ptr.hbm [resolvable:$true] %s1866
          %1872 = dma.vmem_to_hbm [thread:$0]  %s1865, 256, %s1867, %s1842, 128, 128, 8
        $region100: #{busnet_finetune_forward.1} parent=95 // pred_fallthru
          _
        // Predicated region
        $region101: #{busnet_finetune_forward.1} parent=95 // pred_check
          %p1873 = pneg %p487
        $region102: #{busnet_finetune_forward.1} parent=95 // pred_check_branch
          %1875 = sbr.rel (%p1873) target = $region104
        $region103: #{busnet_finetune_forward.1} parent=95 // pred_region
          %1877 = vsyncadd %s1847, 0
          %s1878 = smul.addr %s39, 2
          %s1879 = smul.addr %s1878, 8
          %s1880 = scalar_lea.hbm %s20, %s1879
          %s1881 = sshll.u32 %s1850, 4
          %s1882 = int_to_ptr.vmem [resolvable:$true] %s1881
          %s1883 = sshll.u32 %s1880, 4
          %s1884 = int_to_ptr.hbm [resolvable:$true] %s1883
          %1889 = dma.vmem_to_hbm [thread:$0]  %s1882, 256, %s1884, %s1847, 128, 128, 8
        $region104: #{busnet_finetune_forward.1} parent=95 // pred_fallthru
          _
        // Predicated region
        $region105: #{busnet_finetune_forward.1} parent=95 // pred_check
          %p1890 = pneg %p513
        $region106: #{busnet_finetune_forward.1} parent=95 // pred_check_branch
          %1892 = sbr.rel (%p1890) target = $region108
        $region107: #{busnet_finetune_forward.1} parent=95 // pred_region
          _
        $region108: #{busnet_finetune_forward.1} parent=95 // pred_fallthru
          _
      $region96: #{busnet_finetune_forward.1} parent=5 // pred_fallthru
        _
      %p1893 = scmp.le.s32.totalorder 2, %s34
      // Predicated region
      $region109: #{busnet_finetune_forward.1} parent=5 // pred_check
        %p1894 = pneg %p1893
      $region110: #{busnet_finetune_forward.1} parent=5 // pred_check_branch
        %1896 = sbr.rel (%p1894) target = $region112
      $region111: #{busnet_finetune_forward.1} parent=5 // pred_region
        %s1897 = ssub.s32 %s34, 2
        // Predicated region
        $region113: #{busnet_finetune_forward.1} parent=111 // pred_check
          %p1898 = pneg %p467
        $region114: #{busnet_finetune_forward.1} parent=111 // pred_check_branch
          %1900 = sbr.rel (%p1898) target = $region116
        $region115: #{busnet_finetune_forward.1} parent=111 // pred_region
          %s1901 = sand.u32 %s452, 1
          %s1902 = scalar_lea.sflag [#allocation3], %s1901
          %s1903 = sand.u32 %s452, 1
          %s1904 = smul.addr %s1903, 16
          %s1905 = scalar_lea.vmem [#allocation2], %s1904
          %1907 = dma.done %s1902, 256
        $region116: #{busnet_finetune_forward.1} parent=111 // pred_fallthru
          _
        // Predicated region
        $region117: #{busnet_finetune_forward.1} parent=111 // pred_check
          %p1908 = pneg %p493
        $region118: #{busnet_finetune_forward.1} parent=111 // pred_check_branch
          %1910 = sbr.rel (%p1908) target = $region120
        $region119: #{busnet_finetune_forward.1} parent=111 // pred_region
          %s1911 = sand.u32 %s478, 1
          %s1912 = scalar_lea.sflag [#allocation5], %s1911
          %s1913 = sand.u32 %s478, 1
          %s1914 = smul.addr %s1913, 16
          %s1915 = scalar_lea.vmem [#allocation4], %s1914
          %1917 = dma.done %s1912, 256
        $region120: #{busnet_finetune_forward.1} parent=111 // pred_fallthru
          _
        // Predicated region
        $region121: #{busnet_finetune_forward.1} parent=111 // pred_check
          %p1918 = pneg %p519
        $region122: #{busnet_finetune_forward.1} parent=111 // pred_check_branch
          %1920 = sbr.rel (%p1918) target = $region124
        $region123: #{busnet_finetune_forward.1} parent=111 // pred_region
          %p1921 = scmp.lt.s32.totalorder %s40, 1
          %s1922 = scalar_select %p1921, %s40, 1
          %s1923 = smul.addr %s1922, 2
          %s1924 = smul.addr %s1923, 8
          %s1925 = scalar_lea.vmem %s21, %s1924
        $region124: #{busnet_finetune_forward.1} parent=111 // pred_fallthru
          _
      $region112: #{busnet_finetune_forward.1} parent=5 // pred_fallthru
        _
    $region6: #{busnet_finetune_forward.1} parent=1 // loop_footer
      %s38 = sadd.s32 1, %s34
    $region7: #{busnet_finetune_forward.1} parent=1 // loop_footer_branch
      %33 = sbr.rel target = $region3
    $region8: #{busnet_finetune_forward.1} parent=1 // loop_exit
      _
    %1926 = vsyncpa [#allocation3], 1
    %s1927 = scalar_lea.sflag [#allocation3], 1
    %1928 = vsyncpa %s1927, 1
    %1929 = vsyncpa [#allocation5], 1
    %s1930 = scalar_lea.sflag [#allocation5], 1
    %1931 = vsyncpa %s1930, 1

</llo_original>
